<compile_context>
chip_gen: v7x
topology: tpu7x:2x2x1
jax: 0.10.0
libtpu: 0.0.40
codegen_flags: <defaults>
</compile_context>

<pallas_src>
import functools
import math

import jax
import jax.numpy as jnp
from jax import lax
from jax.experimental import pallas as pl
from jax.experimental.pallas import tpu as pltpu


def _round_up(x, m):
    return (x + m - 1) // m * m


# --------------------------------------------------------------------------
# Pallas kernel: out = combined_dw7x7(x) + bias   (identity skip folded into
# the centre tap of the combined filter)
# --------------------------------------------------------------------------
def _ppeg_kernel(x_ref, w_ref, b_ref, out_ref, xpad_ref, *, H, W, Wp, R):
    # x_ref   : (bb, H, W, tc)    unpadded input tile
    # w_ref   : (49, tc)          combined 7x7 depthwise filter (f32)
    # b_ref   : (1, tc)           combined bias (f32)
    # out_ref : (bb, H, W, tc)
    # xpad_ref: (bb, H+6, Wp, tc) f32 VMEM scratch; Wp = round_up(W+6, 8)
    bb = out_ref.shape[0]
    tc = out_ref.shape[3]

    # Build the zero-padded tile in VMEM (no HBM round trip for the pad).
    # Data occupies rows [3, 3+H) x cols [0, W); rows [0,3) & [3+H, H+6) and
    # cols [W, Wp) stay zero.  Re-zeroed every step: safe under any grid
    # sharding (v7x core split) because nothing is carried across steps.
    xpad_ref[...] = jnp.zeros_like(xpad_ref)
    xpad_ref[:, 3:3 + H, 0:W, :] = x_ref[...].astype(xpad_ref.dtype)

    bias = b_ref[...].reshape(1, 1, 1, tc)          # (1,1,1,tc) f32
    n_chunks = pl.cdiv(H, R)

    def chunk_body(ci, carry):
        # Clamp the last chunk so stores never go out of bounds (it simply
        # recomputes a few already-written rows with identical values).
        h0 = jnp.minimum(ci * R, H - R)
        # Small register-resident f32 accumulator; bias folded into its init.
        acc = jnp.broadcast_to(bias, (bb, R, Wp, tc))
        for di in range(7):
            # One aligned, full-width row-slab load per di (7 per chunk).
            slab = xpad_ref[:, pl.ds(h0 + di, R), :, :]
            for dj in range(7):
                # Column shift via an XLU sublane rotate.  Wrapped columns
                # land in the zero pad [W, Wp), so on the used columns
                # [0, W) this is exactly zero-padded convolution.
                if dj == 3:
                    shifted = slab
                else:
                    shifted = pltpu.roll(slab, shift=(3 - dj) % Wp, axis=2)
                acc = acc + shifted * w_ref[di * 7 + dj, :]
        out_ref[:, pl.ds(h0, R), :, :] = acc[:, :, :W, :].astype(out_ref.dtype)
        return carry

    lax.fori_loop(0, n_chunks, chunk_body, 0)


# --------------------------------------------------------------------------
# Wrapper helpers
# --------------------------------------------------------------------------
def _fold_filters(w7, w5, w3):
    """Fold the 7/5/3 depthwise filters + identity skip into one 7x7 filter."""
    w = (w7
         + jnp.pad(w5, ((1, 1), (1, 1), (0, 0)))
         + jnp.pad(w3, ((2, 2), (2, 2), (0, 0))))
    return w.at[3, 3, :].add(1.0)          # residual connection as centre tap


def _vmem_capacity_bytes():
    try:
        return int(pltpu.get_tpu_info().vmem_capacity_bytes)
    except Exception:
        return 64 * 1024 * 1024            # conservative (v7x per-core VMEM)


def _choose_tiles(B, H, W, Wp, Cp, itemsize, budget):
    """Pick (channel tile, batch tile): biggest blocks fitting the VMEM budget,
    preferring configurations with >= 2 grid steps (keeps v7x's 2nd core busy)."""
    best = None
    for tc in range(128, Cp + 1, 128):
        if Cp % tc:
            continue
        for bb in range(1, B + 1):
            if B % bb:
                continue
            blk = bb * H * W * tc * itemsize          # one input/output block
            scratch = bb * (H + 6) * Wp * tc * 4      # f32 padded scratch
            foot = 4 * blk + scratch + 2 * 50 * tc * 4
            if foot > budget:
                continue
            steps = (Cp // tc) * (B // bb)
            key = (steps >= 2, bb * tc, tc)
            if best is None or key > best[0]:
                best = (key, (tc, bb))
    if best is None:
        # TODO(synk): grid-level spatial tiling (with halo) for very large H*W
        # images whose single (batch, channel) block does not fit the budget.
        return 128, 1
    return best[1]


def ppeg_conv_sum(x_nhwc, w_eff, bias):
    """(B,H,W,C) -> (B,H,W,C): x + dw7(x) + dw5(x) + dw3(x) + bias."""
    B, H, W, C = x_nhwc.shape
    dtype = x_nhwc.dtype
    itemsize = jnp.dtype(dtype).itemsize

    # lane-dense channels: pad C to a multiple of 128 (sliced off afterwards)
    Cp = _round_up(C, 128)
    if Cp != C:
        x_nhwc = jnp.pad(x_nhwc, ((0, 0), (0, 0), (0, 0), (0, Cp - C)))
        w_eff = jnp.pad(w_eff, ((0, 0), (0, 0), (0, Cp - C)))
        bias = jnp.pad(bias, ((0, 0), (0, Cp - C)))
    w_flat = w_eff.reshape(49, Cp).astype(jnp.float32)
    bias = bias.astype(jnp.float32)

    # padded scratch width: >= W+6 and a multiple of 8 (aligned sublane rolls)
    Wp = _round_up(W + 6, 8)

    vmem_cap = _vmem_capacity_bytes()
    vmem_limit = (vmem_cap * 5) // 8          # explicit scoped-VMEM limit
    budget = (vmem_limit * 3) // 4            # working-set target for tiles
    tc, bb = _choose_tiles(B, H, W, Wp, Cp, itemsize, budget)

    # rows per in-kernel chunk: keep the f32 accumulator around ~8 vregs so
    # the 49-tap accumulation stays register resident (one store per chunk).
    R = max(1, min(H, (8 * 4096) // (bb * Wp * tc * 4)))

    # channel slow, batch fast: weight/bias block index is constant across the
    # fast axis, so their DMA is not re-issued every step.
    grid = (Cp // tc, B // bb)
    kernel = functools.partial(_ppeg_kernel, H=H, W=W, Wp=Wp, R=R)
    y = pl.pallas_call(
        kernel,
        out_shape=jax.ShapeDtypeStruct((B, H, W, Cp), dtype),
        grid=grid,
        in_specs=[
            pl.BlockSpec((bb, H, W, tc), lambda c, b: (b, 0, 0, c)),
            pl.BlockSpec((49, tc), lambda c, b: (0, c)),
            pl.BlockSpec((1, tc), lambda c, b: (0, c)),
        ],
        out_specs=pl.BlockSpec((bb, H, W, tc), lambda c, b: (b, 0, 0, c)),
        scratch_shapes=[pltpu.VMEM((bb, H + 6, Wp, tc), jnp.float32)],
        compiler_params=pltpu.CompilerParams(
            dimension_semantics=("parallel", "parallel"),
            vmem_limit_bytes=int(vmem_limit)),
    )(x_nhwc, w_flat, bias)
    return y[..., :C] if Cp != C else y


# --------------------------------------------------------------------------
# Full PPEG forward (token padding / reshape glue in plain JAX, under jit)
# --------------------------------------------------------------------------
@jax.jit
def ppeg_forward(x, params):
    """x: (B, N, C) -> (B, N, C), matching the PyTorch PPEG.forward semantics."""
    B, N, C = x.shape
    H = W = int(math.ceil(math.sqrt(N)))
    add_length = H * W - N
    x = jnp.concatenate([x, x[:, :add_length, :]], axis=1)
    if H < 7:
        H = W = 7
        zero_pad = H * W - (N + add_length)
        x = jnp.concatenate([x, jnp.zeros((B, zero_pad, C), x.dtype)], axis=1)
        add_length += zero_pad
    # PyTorch: x.transpose(1,2).view(B,C,H,W)  ==  token n -> (h,w)=(n//W, n%W)
    cnn_feat = x.reshape(B, H, W, C)                      # NHWC
    w_eff = _fold_filters(params["w7"], params["w5"], params["w3"])
    y = ppeg_conv_sum(cnn_feat, w_eff, params["bias"])
    y = y.reshape(B, H * W, C)
    if add_length > 0:
        y = y[:, :-add_length]
    return y


# --------------------------------------------------------------------------
# Pure-JAX reference (unfolded filters, no Pallas) for a sanity check
# --------------------------------------------------------------------------
def ppeg_reference(x, params):
    B, N, C = x.shape
    H = W = int(math.ceil(math.sqrt(N)))
    add_length = H * W - N
    x = jnp.concatenate([x, x[:, :add_length, :]], axis=1)
    if H < 7:
        H = W = 7
        zero_pad = H * W - (N + add_length)
        x = jnp.concatenate([x, jnp.zeros((B, zero_pad, C), x.dtype)], axis=1)
        add_length += zero_pad
    feat = x.reshape(B, H, W, C).astype(jnp.float32)
    xpad = jnp.pad(feat, ((0, 0), (3, 3), (3, 3), (0, 0)))
    acc = feat + params["bias"][0][None, None, None, :]
    for k, w in ((7, params["w7"]), (5, params["w5"]), (3, params["w3"])):
        off = 3 - k // 2
        for di in range(k):
            for dj in range(k):
                acc = acc + (xpad[:, off + di:off + di + H,
                                  off + dj:off + dj + W, :]
                             * w[di, dj, :][None, None, None, :])
    y = acc.reshape(B, H * W, C)
    if add_length > 0:
        y = y[:, :-add_length]
    return y


# --------------------------------------------------------------------------
def init_params(key, dim):
    """Deterministic synthetic params.  PyTorch Conv2d(groups=dim) weights have
    shape (dim, 1, k, k); stored channel-last as (k, k, dim).  The three
    per-conv biases are summed into one (1, dim) vector (math is identical)."""
    k7, k5, k3, kb = jax.random.split(key, 4)
    w7 = 0.05 * jax.random.normal(k7, (7, 7, dim), jnp.float32)
    w5 = 0.05 * jax.random.normal(k5, (5, 5, dim), jnp.float32)
    w3 = 0.05 * jax.random.normal(k3, (3, 3, dim), jnp.float32)
    b7, b5, b3 = (0.01 * jax.random.normal(kb, (3, dim), jnp.float32))
    bias = (b7 + b5 + b3).reshape(1, dim)
    return {"w7": w7, "w5": w5, "w3": w3, "bias": bias}


if __name__ == "__main__":
    key = jax.random.PRNGKey(0)
    kx, kp = jax.random.split(key)

    B, N, C = 2, 50, 64          # -> H = W = 8 spatial grid, add_length = 14
    x = jax.random.normal(kx, (B, N, C), jnp.float32)
    params = init_params(kp, C)

    out = ppeg_forward(x, params)
    out = jax.block_until_ready(out)
    assert out.shape == (B, N, C), out.shape

    ref = jax.block_until_ready(ppeg_reference(x, params))
    assert jnp.allclose(out, ref, rtol=1e-4, atol=1e-4), "mismatch vs reference"

    # also exercise the H < 7 branch (N small -> padded up to 7x7 grid)
    x_small = jax.random.normal(kx, (B, 8, C), jnp.float32)
    out_small = jax.block_until_ready(ppeg_forward(x_small, params))
    assert out_small.shape == (B, 8, C)
    ref_small = jax.block_until_ready(ppeg_reference(x_small, params))
    assert jnp.allclose(out_small, ref_small, rtol=1e-4, atol=1e-4)

    print("KERNEL_OK")
</pallas_src>

<mosaic_0001>
module attributes {stable_mosaic.version = 11 : i64} {
  func.func @_ppeg_kernel(%arg0: i32, %arg1: i32, %arg2: memref<1x8x8x128xf32, #tpu.memory_space<vmem>>, %arg3: memref<49x128xf32, #tpu.memory_space<vmem>>, %arg4: memref<1x128xf32, #tpu.memory_space<vmem>>, %arg5: memref<1x8x8x128xf32, #tpu.memory_space<vmem>>, %arg6: memref<1x14x16x128xf32, #tpu.memory_space<vmem>>) attributes {dimension_semantics = [#tpu.dimension_semantics<parallel>, #tpu.dimension_semantics<parallel>], iteration_bounds = array<i64: 1, 2>, scalar_prefetch = 0 : i64, scratch_operands = 1 : i64, tpu.core_type = #tpu.core_type<tc>, window_params = [{transform_indices = @transform_0, window_bounds = array<i64: 1, 8, 8, 128>}, {transform_indices = @transform_1, window_bounds = array<i64: 49, 128>}, {transform_indices = @transform_2, window_bounds = array<i64: 1, 128>}, {transform_indices = @transform_3, window_bounds = array<i64: 1, 8, 8, 128>}]} {
    %cst = arith.constant 0.000000e+00 : f32
    %0 = vector.broadcast %cst : f32 to vector<1x14x16x128xf32>
    %c0 = arith.constant 0 : index
    %c0_0 = arith.constant 0 : index
    %c0_1 = arith.constant 0 : index
    %c0_2 = arith.constant 0 : index
    %1 = vector.load %arg6[%c0, %c0_0, %c0_1, %c0_2] : memref<1x14x16x128xf32, #tpu.memory_space<vmem>>, vector<1x14x16x128xf32>
    tpu.vector_store %arg6[%c0, %c0_0, %c0_1, %c0_2], %0 {strides = array<i32>} : memref<1x14x16x128xf32, #tpu.memory_space<vmem>>, vector<1x14x16x128xf32>,
    %c0_3 = arith.constant 0 : index
    %c0_4 = arith.constant 0 : index
    %c0_5 = arith.constant 0 : index
    %c0_6 = arith.constant 0 : index
    %2 = vector.load %arg2[%c0_3, %c0_4, %c0_5, %c0_6] : memref<1x8x8x128xf32, #tpu.memory_space<vmem>>, vector<1x8x8x128xf32>
    %c0_7 = arith.constant 0 : index
    %c3 = arith.constant 3 : index
    %c0_8 = arith.constant 0 : index
    %c0_9 = arith.constant 0 : index
    %3 = vector.load %arg6[%c0_7, %c3, %c0_8, %c0_9] : memref<1x14x16x128xf32, #tpu.memory_space<vmem>>, vector<1x8x8x128xf32>
    tpu.vector_store %arg6[%c0_7, %c3, %c0_8, %c0_9], %2 {strides = array<i32>} : memref<1x14x16x128xf32, #tpu.memory_space<vmem>>, vector<1x8x8x128xf32>,
    %c0_10 = arith.constant 0 : index
    %c0_11 = arith.constant 0 : index
    %4 = vector.load %arg4[%c0_10, %c0_11] : memref<1x128xf32, #tpu.memory_space<vmem>>, vector<1x128xf32>
    %5 = vector.shape_cast %4 : vector<1x128xf32> to vector<1x1x1x128xf32>
    %c0_i32 = arith.constant 0 : i32
    %c2_i32 = arith.constant 2 : i32
    %6 = arith.addi %c0_i32, %c2_i32 : i32
    %c1_i32 = arith.constant 1 : i32
    scf.for %arg7 = %c0_i32 to %6 step %c1_i32  : i32 {
      %c4_i32 = arith.constant 4 : i32
      %7 = arith.muli %arg7, %c4_i32 : i32
      %c4_i32_13 = arith.constant 4 : i32
      %8 = arith.minsi %7, %c4_i32_13 : i32
      %9 = vector.shape_cast %5 : vector<1x1x1x128xf32> to vector<1x1x1x128xf32>
      %10 = vector.broadcast %9 : vector<1x1x1x128xf32> to vector<1x4x16x128xf32>
      %c0_i32_14 = arith.constant 0 : i32
      %11 = arith.addi %8, %c0_i32_14 : i32
      %c0_15 = arith.constant 0 : index
      %12 = arith.index_cast %11 : i32 to index
      %c0_16 = arith.constant 0 : index
      %c0_17 = arith.constant 0 : index
      %13 = vector.load %arg6[%c0_15, %12, %c0_16, %c0_17] : memref<1x14x16x128xf32, #tpu.memory_space<vmem>>, vector<1x4x16x128xf32>
      %c3_i32 = arith.constant 3 : i32
      %14 = tpu.dynamic_rotate %13 by %c3_i32 dim 2 : vector<1x4x16x128xf32>, i32 -> vector<1x4x16x128xf32>
      %c0_18 = arith.constant 0 : index
      %c0_19 = arith.constant 0 : index
      %15 = vector.load %arg3[%c0_18, %c0_19] : memref<49x128xf32, #tpu.memory_space<vmem>>, vector<1x128xf32>
      %16 = vector.shape_cast %15 : vector<1x128xf32> to vector<128xf32>
      %17 = vector.shape_cast %16 : vector<128xf32> to vector<1x1x1x128xf32>
      %18 = vector.broadcast %17 : vector<1x1x1x128xf32> to vector<1x4x16x128xf32>
      %19 = arith.mulf %14, %18 : vector<1x4x16x128xf32>
      %20 = arith.addf %10, %19 : vector<1x4x16x128xf32>
      %c2_i32_20 = arith.constant 2 : i32
      %21 = tpu.dynamic_rotate %13 by %c2_i32_20 dim 2 : vector<1x4x16x128xf32>, i32 -> vector<1x4x16x128xf32>
      %c1 = arith.constant 1 : index
      %c0_21 = arith.constant 0 : index
      %22 = vector.load %arg3[%c1, %c0_21] : memref<49x128xf32, #tpu.memory_space<vmem>>, vector<1x128xf32>
      %23 = vector.shape_cast %22 : vector<1x128xf32> to vector<128xf32>
      %24 = vector.shape_cast %23 : vector<128xf32> to vector<1x1x1x128xf32>
      %25 = vector.broadcast %24 : vector<1x1x1x128xf32> to vector<1x4x16x128xf32>
      %26 = arith.mulf %21, %25 : vector<1x4x16x128xf32>
      %27 = arith.addf %20, %26 : vector<1x4x16x128xf32>
      %c1_i32_22 = arith.constant 1 : i32
      %28 = tpu.dynamic_rotate %13 by %c1_i32_22 dim 2 : vector<1x4x16x128xf32>, i32 -> vector<1x4x16x128xf32>
      %c2 = arith.constant 2 : index
      %c0_23 = arith.constant 0 : index
      %29 = vector.load %arg3[%c2, %c0_23] : memref<49x128xf32, #tpu.memory_space<vmem>>, vector<1x128xf32>
      %30 = vector.shape_cast %29 : vector<1x128xf32> to vector<128xf32>
      %31 = vector.shape_cast %30 : vector<128xf32> to vector<1x1x1x128xf32>
      %32 = vector.broadcast %31 : vector<1x1x1x128xf32> to vector<1x4x16x128xf32>
      %33 = arith.mulf %28, %32 : vector<1x4x16x128xf32>
      %34 = arith.addf %27, %33 : vector<1x4x16x128xf32>
      %c3_24 = arith.constant 3 : index
      %c0_25 = arith.constant 0 : index
      %35 = vector.load %arg3[%c3_24, %c0_25] : memref<49x128xf32, #tpu.memory_space<vmem>>, vector<1x128xf32>
      %36 = vector.shape_cast %35 : vector<1x128xf32> to vector<128xf32>
      %37 = vector.shape_cast %36 : vector<128xf32> to vector<1x1x1x128xf32>
      %38 = vector.broadcast %37 : vector<1x1x1x128xf32> to vector<1x4x16x128xf32>
      %39 = arith.mulf %13, %38 : vector<1x4x16x128xf32>
      %40 = arith.addf %34, %39 : vector<1x4x16x128xf32>
      %c15_i32 = arith.constant 15 : i32
      %41 = tpu.dynamic_rotate %13 by %c15_i32 dim 2 : vector<1x4x16x128xf32>, i32 -> vector<1x4x16x128xf32>
      %c4 = arith.constant 4 : index
      %c0_26 = arith.constant 0 : index
      %42 = vector.load %arg3[%c4, %c0_26] : memref<49x128xf32, #tpu.memory_space<vmem>>, vector<1x128xf32>
      %43 = vector.shape_cast %42 : vector<1x128xf32> to vector<128xf32>
      %44 = vector.shape_cast %43 : vector<128xf32> to vector<1x1x1x128xf32>
      %45 = vector.broadcast %44 : vector<1x1x1x128xf32> to vector<1x4x16x128xf32>
      %46 = arith.mulf %41, %45 : vector<1x4x16x128xf32>
      %47 = arith.addf %40, %46 : vector<1x4x16x128xf32>
      %c14_i32 = arith.constant 14 : i32
      %48 = tpu.dynamic_rotate %13 by %c14_i32 dim 2 : vector<1x4x16x128xf32>, i32 -> vector<1x4x16x128xf32>
      %c5 = arith.constant 5 : index
      %c0_27 = arith.constant 0 : index
      %49 = vector.load %arg3[%c5, %c0_27] : memref<49x128xf32, #tpu.memory_space<vmem>>, vector<1x128xf32>
      %50 = vector.shape_cast %49 : vector<1x128xf32> to vector<128xf32>
      %51 = vector.shape_cast %50 : vector<128xf32> to vector<1x1x1x128xf32>
      %52 = vector.broadcast %51 : vector<1x1x1x128xf32> to vector<1x4x16x128xf32>
      %53 = arith.mulf %48, %52 : vector<1x4x16x128xf32>
      %54 = arith.addf %47, %53 : vector<1x4x16x128xf32>
      %c13_i32 = arith.constant 13 : i32
      %55 = tpu.dynamic_rotate %13 by %c13_i32 dim 2 : vector<1x4x16x128xf32>, i32 -> vector<1x4x16x128xf32>
      %c6 = arith.constant 6 : index
      %c0_28 = arith.constant 0 : index
      %56 = vector.load %arg3[%c6, %c0_28] : memref<49x128xf32, #tpu.memory_space<vmem>>, vector<1x128xf32>
      %57 = vector.shape_cast %56 : vector<1x128xf32> to vector<128xf32>
      %58 = vector.shape_cast %57 : vector<128xf32> to vector<1x1x1x128xf32>
      %59 = vector.broadcast %58 : vector<1x1x1x128xf32> to vector<1x4x16x128xf32>
      %60 = arith.mulf %55, %59 : vector<1x4x16x128xf32>
      %61 = arith.addf %54, %60 : vector<1x4x16x128xf32>
      %c1_i32_29 = arith.constant 1 : i32
      %62 = arith.addi %8, %c1_i32_29 : i32
      %c0_30 = arith.constant 0 : index
      %63 = arith.index_cast %62 : i32 to index
      %c0_31 = arith.constant 0 : index
      %c0_32 = arith.constant 0 : index
      %64 = vector.load %arg6[%c0_30, %63, %c0_31, %c0_32] : memref<1x14x16x128xf32, #tpu.memory_space<vmem>>, vector<1x4x16x128xf32>
      %c3_i32_33 = arith.constant 3 : i32
      %65 = tpu.dynamic_rotate %64 by %c3_i32_33 dim 2 : vector<1x4x16x128xf32>, i32 -> vector<1x4x16x128xf32>
      %c7 = arith.constant 7 : index
      %c0_34 = arith.constant 0 : index
      %66 = vector.load %arg3[%c7, %c0_34] : memref<49x128xf32, #tpu.memory_space<vmem>>, vector<1x128xf32>
      %67 = vector.shape_cast %66 : vector<1x128xf32> to vector<128xf32>
      %68 = vector.shape_cast %67 : vector<128xf32> to vector<1x1x1x128xf32>
      %69 = vector.broadcast %68 : vector<1x1x1x128xf32> to vector<1x4x16x128xf32>
      %70 = arith.mulf %65, %69 : vector<1x4x16x128xf32>
      %71 = arith.addf %61, %70 : vector<1x4x16x128xf32>
      %c2_i32_35 = arith.constant 2 : i32
      %72 = tpu.dynamic_rotate %64 by %c2_i32_35 dim 2 : vector<1x4x16x128xf32>, i32 -> vector<1x4x16x128xf32>
      %c8 = arith.constant 8 : index
      %c0_36 = arith.constant 0 : index
      %73 = vector.load %arg3[%c8, %c0_36] : memref<49x128xf32, #tpu.memory_space<vmem>>, vector<1x128xf32>
      %74 = vector.shape_cast %73 : vector<1x128xf32> to vector<128xf32>
      %75 = vector.shape_cast %74 : vector<128xf32> to vector<1x1x1x128xf32>
      %76 = vector.broadcast %75 : vector<1x1x1x128xf32> to vector<1x4x16x128xf32>
      %77 = arith.mulf %72, %76 : vector<1x4x16x128xf32>
      %78 = arith.addf %71, %77 : vector<1x4x16x128xf32>
      %c1_i32_37 = arith.constant 1 : i32
      %79 = tpu.dynamic_rotate %64 by %c1_i32_37 dim 2 : vector<1x4x16x128xf32>, i32 -> vector<1x4x16x128xf32>
      %c9 = arith.constant 9 : index
      %c0_38 = arith.constant 0 : index
      %80 = vector.load %arg3[%c9, %c0_38] : memref<49x128xf32, #tpu.memory_space<vmem>>, vector<1x128xf32>
      %81 = vector.shape_cast %80 : vector<1x128xf32> to vector<128xf32>
      %82 = vector.shape_cast %81 : vector<128xf32> to vector<1x1x1x128xf32>
      %83 = vector.broadcast %82 : vector<1x1x1x128xf32> to vector<1x4x16x128xf32>
      %84 = arith.mulf %79, %83 : vector<1x4x16x128xf32>
      %85 = arith.addf %78, %84 : vector<1x4x16x128xf32>
      %c10 = arith.constant 10 : index
      %c0_39 = arith.constant 0 : index
      %86 = vector.load %arg3[%c10, %c0_39] : memref<49x128xf32, #tpu.memory_space<vmem>>, vector<1x128xf32>
      %87 = vector.shape_cast %86 : vector<1x128xf32> to vector<128xf32>
      %88 = vector.shape_cast %87 : vector<128xf32> to vector<1x1x1x128xf32>
      %89 = vector.broadcast %88 : vector<1x1x1x128xf32> to vector<1x4x16x128xf32>
      %90 = arith.mulf %64, %89 : vector<1x4x16x128xf32>
      %91 = arith.addf %85, %90 : vector<1x4x16x128xf32>
      %c15_i32_40 = arith.constant 15 : i32
      %92 = tpu.dynamic_rotate %64 by %c15_i32_40 dim 2 : vector<1x4x16x128xf32>, i32 -> vector<1x4x16x128xf32>
      %c11 = arith.constant 11 : index
      %c0_41 = arith.constant 0 : index
      %93 = vector.load %arg3[%c11, %c0_41] : memref<49x128xf32, #tpu.memory_space<vmem>>, vector<1x128xf32>
      %94 = vector.shape_cast %93 : vector<1x128xf32> to vector<128xf32>
      %95 = vector.shape_cast %94 : vector<128xf32> to vector<1x1x1x128xf32>
      %96 = vector.broadcast %95 : vector<1x1x1x128xf32> to vector<1x4x16x128xf32>
      %97 = arith.mulf %92, %96 : vector<1x4x16x128xf32>
      %98 = arith.addf %91, %97 : vector<1x4x16x128xf32>
      %c14_i32_42 = arith.constant 14 : i32
      %99 = tpu.dynamic_rotate %64 by %c14_i32_42 dim 2 : vector<1x4x16x128xf32>, i32 -> vector<1x4x16x128xf32>
      %c12 = arith.constant 12 : index
      %c0_43 = arith.constant 0 : index
      %100 = vector.load %arg3[%c12, %c0_43] : memref<49x128xf32, #tpu.memory_space<vmem>>, vector<1x128xf32>
      %101 = vector.shape_cast %100 : vector<1x128xf32> to vector<128xf32>
      %102 = vector.shape_cast %101 : vector<128xf32> to vector<1x1x1x128xf32>
      %103 = vector.broadcast %102 : vector<1x1x1x128xf32> to vector<1x4x16x128xf32>
      %104 = arith.mulf %99, %103 : vector<1x4x16x128xf32>
      %105 = arith.addf %98, %104 : vector<1x4x16x128xf32>
      %c13_i32_44 = arith.constant 13 : i32
      %106 = tpu.dynamic_rotate %64 by %c13_i32_44 dim 2 : vector<1x4x16x128xf32>, i32 -> vector<1x4x16x128xf32>
      %c13 = arith.constant 13 : index
      %c0_45 = arith.constant 0 : index
      %107 = vector.load %arg3[%c13, %c0_45] : memref<49x128xf32, #tpu.memory_space<vmem>>, vector<1x128xf32>
      %108 = vector.shape_cast %107 : vector<1x128xf32> to vector<128xf32>
      %109 = vector.shape_cast %108 : vector<128xf32> to vector<1x1x1x128xf32>
      %110 = vector.broadcast %109 : vector<1x1x1x128xf32> to vector<1x4x16x128xf32>
      %111 = arith.mulf %106, %110 : vector<1x4x16x128xf32>
      %112 = arith.addf %105, %111 : vector<1x4x16x128xf32>
      %c2_i32_46 = arith.constant 2 : i32
      %113 = arith.addi %8, %c2_i32_46 : i32
      %c0_47 = arith.constant 0 : index
      %114 = arith.index_cast %113 : i32 to index
      %c0_48 = arith.constant 0 : index
      %c0_49 = arith.constant 0 : index
      %115 = vector.load %arg6[%c0_47, %114, %c0_48, %c0_49] : memref<1x14x16x128xf32, #tpu.memory_space<vmem>>, vector<1x4x16x128xf32>
      %c3_i32_50 = arith.constant 3 : i32
      %116 = tpu.dynamic_rotate %115 by %c3_i32_50 dim 2 : vector<1x4x16x128xf32>, i32 -> vector<1x4x16x128xf32>
      %c14 = arith.constant 14 : index
      %c0_51 = arith.constant 0 : index
      %117 = vector.load %arg3[%c14, %c0_51] : memref<49x128xf32, #tpu.memory_space<vmem>>, vector<1x128xf32>
      %118 = vector.shape_cast %117 : vector<1x128xf32> to vector<128xf32>
      %119 = vector.shape_cast %118 : vector<128xf32> to vector<1x1x1x128xf32>
      %120 = vector.broadcast %119 : vector<1x1x1x128xf32> to vector<1x4x16x128xf32>
      %121 = arith.mulf %116, %120 : vector<1x4x16x128xf32>
      %122 = arith.addf %112, %121 : vector<1x4x16x128xf32>
      %c2_i32_52 = arith.constant 2 : i32
      %123 = tpu.dynamic_rotate %115 by %c2_i32_52 dim 2 : vector<1x4x16x128xf32>, i32 -> vector<1x4x16x128xf32>
      %c15 = arith.constant 15 : index
      %c0_53 = arith.constant 0 : index
      %124 = vector.load %arg3[%c15, %c0_53] : memref<49x128xf32, #tpu.memory_space<vmem>>, vector<1x128xf32>
      %125 = vector.shape_cast %124 : vector<1x128xf32> to vector<128xf32>
      %126 = vector.shape_cast %125 : vector<128xf32> to vector<1x1x1x128xf32>
      %127 = vector.broadcast %126 : vector<1x1x1x128xf32> to vector<1x4x16x128xf32>
      %128 = arith.mulf %123, %127 : vector<1x4x16x128xf32>
      %129 = arith.addf %122, %128 : vector<1x4x16x128xf32>
      %c1_i32_54 = arith.constant 1 : i32
      %130 = tpu.dynamic_rotate %115 by %c1_i32_54 dim 2 : vector<1x4x16x128xf32>, i32 -> vector<1x4x16x128xf32>
      %c16 = arith.constant 16 : index
      %c0_55 = arith.constant 0 : index
      %131 = vector.load %arg3[%c16, %c0_55] : memref<49x128xf32, #tpu.memory_space<vmem>>, vector<1x128xf32>
      %132 = vector.shape_cast %131 : vector<1x128xf32> to vector<128xf32>
      %133 = vector.shape_cast %132 : vector<128xf32> to vector<1x1x1x128xf32>
      %134 = vector.broadcast %133 : vector<1x1x1x128xf32> to vector<1x4x16x128xf32>
      %135 = arith.mulf %130, %134 : vector<1x4x16x128xf32>
      %136 = arith.addf %129, %135 : vector<1x4x16x128xf32>
      %c17 = arith.constant 17 : index
      %c0_56 = arith.constant 0 : index
      %137 = vector.load %arg3[%c17, %c0_56] : memref<49x128xf32, #tpu.memory_space<vmem>>, vector<1x128xf32>
      %138 = vector.shape_cast %137 : vector<1x128xf32> to vector<128xf32>
      %139 = vector.shape_cast %138 : vector<128xf32> to vector<1x1x1x128xf32>
      %140 = vector.broadcast %139 : vector<1x1x1x128xf32> to vector<1x4x16x128xf32>
      %141 = arith.mulf %115, %140 : vector<1x4x16x128xf32>
      %142 = arith.addf %136, %141 : vector<1x4x16x128xf32>
      %c15_i32_57 = arith.constant 15 : i32
      %143 = tpu.dynamic_rotate %115 by %c15_i32_57 dim 2 : vector<1x4x16x128xf32>, i32 -> vector<1x4x16x128xf32>
      %c18 = arith.constant 18 : index
      %c0_58 = arith.constant 0 : index
      %144 = vector.load %arg3[%c18, %c0_58] : memref<49x128xf32, #tpu.memory_space<vmem>>, vector<1x128xf32>
      %145 = vector.shape_cast %144 : vector<1x128xf32> to vector<128xf32>
      %146 = vector.shape_cast %145 : vector<128xf32> to vector<1x1x1x128xf32>
      %147 = vector.broadcast %146 : vector<1x1x1x128xf32> to vector<1x4x16x128xf32>
      %148 = arith.mulf %143, %147 : vector<1x4x16x128xf32>
      %149 = arith.addf %142, %148 : vector<1x4x16x128xf32>
      %c14_i32_59 = arith.constant 14 : i32
      %150 = tpu.dynamic_rotate %115 by %c14_i32_59 dim 2 : vector<1x4x16x128xf32>, i32 -> vector<1x4x16x128xf32>
      %c19 = arith.constant 19 : index
      %c0_60 = arith.constant 0 : index
      %151 = vector.load %arg3[%c19, %c0_60] : memref<49x128xf32, #tpu.memory_space<vmem>>, vector<1x128xf32>
      %152 = vector.shape_cast %151 : vector<1x128xf32> to vector<128xf32>
      %153 = vector.shape_cast %152 : vector<128xf32> to vector<1x1x1x128xf32>
      %154 = vector.broadcast %153 : vector<1x1x1x128xf32> to vector<1x4x16x128xf32>
      %155 = arith.mulf %150, %154 : vector<1x4x16x128xf32>
      %156 = arith.addf %149, %155 : vector<1x4x16x128xf32>
      %c13_i32_61 = arith.constant 13 : i32
      %157 = tpu.dynamic_rotate %115 by %c13_i32_61 dim 2 : vector<1x4x16x128xf32>, i32 -> vector<1x4x16x128xf32>
      %c20 = arith.constant 20 : index
      %c0_62 = arith.constant 0 : index
      %158 = vector.load %arg3[%c20, %c0_62] : memref<49x128xf32, #tpu.memory_space<vmem>>, vector<1x128xf32>
      %159 = vector.shape_cast %158 : vector<1x128xf32> to vector<128xf32>
      %160 = vector.shape_cast %159 : vector<128xf32> to vector<1x1x1x128xf32>
      %161 = vector.broadcast %160 : vector<1x1x1x128xf32> to vector<1x4x16x128xf32>
      %162 = arith.mulf %157, %161 : vector<1x4x16x128xf32>
      %163 = arith.addf %156, %162 : vector<1x4x16x128xf32>
      %c3_i32_63 = arith.constant 3 : i32
      %164 = arith.addi %8, %c3_i32_63 : i32
      %c0_64 = arith.constant 0 : index
      %165 = arith.index_cast %164 : i32 to index
      %c0_65 = arith.constant 0 : index
      %c0_66 = arith.constant 0 : index
      %166 = vector.load %arg6[%c0_64, %165, %c0_65, %c0_66] : memref<1x14x16x128xf32, #tpu.memory_space<vmem>>, vector<1x4x16x128xf32>
      %c3_i32_67 = arith.constant 3 : i32
      %167 = tpu.dynamic_rotate %166 by %c3_i32_67 dim 2 : vector<1x4x16x128xf32>, i32 -> vector<1x4x16x128xf32>
      %c21 = arith.constant 21 : index
      %c0_68 = arith.constant 0 : index
      %168 = vector.load %arg3[%c21, %c0_68] : memref<49x128xf32, #tpu.memory_space<vmem>>, vector<1x128xf32>
      %169 = vector.shape_cast %168 : vector<1x128xf32> to vector<128xf32>
      %170 = vector.shape_cast %169 : vector<128xf32> to vector<1x1x1x128xf32>
      %171 = vector.broadcast %170 : vector<1x1x1x128xf32> to vector<1x4x16x128xf32>
      %172 = arith.mulf %167, %171 : vector<1x4x16x128xf32>
      %173 = arith.addf %163, %172 : vector<1x4x16x128xf32>
      %c2_i32_69 = arith.constant 2 : i32
      %174 = tpu.dynamic_rotate %166 by %c2_i32_69 dim 2 : vector<1x4x16x128xf32>, i32 -> vector<1x4x16x128xf32>
      %c22 = arith.constant 22 : index
      %c0_70 = arith.constant 0 : index
      %175 = vector.load %arg3[%c22, %c0_70] : memref<49x128xf32, #tpu.memory_space<vmem>>, vector<1x128xf32>
      %176 = vector.shape_cast %175 : vector<1x128xf32> to vector<128xf32>
      %177 = vector.shape_cast %176 : vector<128xf32> to vector<1x1x1x128xf32>
      %178 = vector.broadcast %177 : vector<1x1x1x128xf32> to vector<1x4x16x128xf32>
      %179 = arith.mulf %174, %178 : vector<1x4x16x128xf32>
      %180 = arith.addf %173, %179 : vector<1x4x16x128xf32>
      %c1_i32_71 = arith.constant 1 : i32
      %181 = tpu.dynamic_rotate %166 by %c1_i32_71 dim 2 : vector<1x4x16x128xf32>, i32 -> vector<1x4x16x128xf32>
      %c23 = arith.constant 23 : index
      %c0_72 = arith.constant 0 : index
      %182 = vector.load %arg3[%c23, %c0_72] : memref<49x128xf32, #tpu.memory_space<vmem>>, vector<1x128xf32>
      %183 = vector.shape_cast %182 : vector<1x128xf32> to vector<128xf32>
      %184 = vector.shape_cast %183 : vector<128xf32> to vector<1x1x1x128xf32>
      %185 = vector.broadcast %184 : vector<1x1x1x128xf32> to vector<1x4x16x128xf32>
      %186 = arith.mulf %181, %185 : vector<1x4x16x128xf32>
      %187 = arith.addf %180, %186 : vector<1x4x16x128xf32>
      %c24 = arith.constant 24 : index
      %c0_73 = arith.constant 0 : index
      %188 = vector.load %arg3[%c24, %c0_73] : memref<49x128xf32, #tpu.memory_space<vmem>>, vector<1x128xf32>
      %189 = vector.shape_cast %188 : vector<1x128xf32> to vector<128xf32>
      %190 = vector.shape_cast %189 : vector<128xf32> to vector<1x1x1x128xf32>
      %191 = vector.broadcast %190 : vector<1x1x1x128xf32> to vector<1x4x16x128xf32>
      %192 = arith.mulf %166, %191 : vector<1x4x16x128xf32>
      %193 = arith.addf %187, %192 : vector<1x4x16x128xf32>
      %c15_i32_74 = arith.constant 15 : i32
      %194 = tpu.dynamic_rotate %166 by %c15_i32_74 dim 2 : vector<1x4x16x128xf32>, i32 -> vector<1x4x16x128xf32>
      %c25 = arith.constant 25 : index
      %c0_75 = arith.constant 0 : index
      %195 = vector.load %arg3[%c25, %c0_75] : memref<49x128xf32, #tpu.memory_space<vmem>>, vector<1x128xf32>
      %196 = vector.shape_cast %195 : vector<1x128xf32> to vector<128xf32>
      %197 = vector.shape_cast %196 : vector<128xf32> to vector<1x1x1x128xf32>
      %198 = vector.broadcast %197 : vector<1x1x1x128xf32> to vector<1x4x16x128xf32>
      %199 = arith.mulf %194, %198 : vector<1x4x16x128xf32>
      %200 = arith.addf %193, %199 : vector<1x4x16x128xf32>
      %c14_i32_76 = arith.constant 14 : i32
      %201 = tpu.dynamic_rotate %166 by %c14_i32_76 dim 2 : vector<1x4x16x128xf32>, i32 -> vector<1x4x16x128xf32>
      %c26 = arith.constant 26 : index
      %c0_77 = arith.constant 0 : index
      %202 = vector.load %arg3[%c26, %c0_77] : memref<49x128xf32, #tpu.memory_space<vmem>>, vector<1x128xf32>
      %203 = vector.shape_cast %202 : vector<1x128xf32> to vector<128xf32>
      %204 = vector.shape_cast %203 : vector<128xf32> to vector<1x1x1x128xf32>
      %205 = vector.broadcast %204 : vector<1x1x1x128xf32> to vector<1x4x16x128xf32>
      %206 = arith.mulf %201, %205 : vector<1x4x16x128xf32>
      %207 = arith.addf %200, %206 : vector<1x4x16x128xf32>
      %c13_i32_78 = arith.constant 13 : i32
      %208 = tpu.dynamic_rotate %166 by %c13_i32_78 dim 2 : vector<1x4x16x128xf32>, i32 -> vector<1x4x16x128xf32>
      %c27 = arith.constant 27 : index
      %c0_79 = arith.constant 0 : index
      %209 = vector.load %arg3[%c27, %c0_79] : memref<49x128xf32, #tpu.memory_space<vmem>>, vector<1x128xf32>
      %210 = vector.shape_cast %209 : vector<1x128xf32> to vector<128xf32>
      %211 = vector.shape_cast %210 : vector<128xf32> to vector<1x1x1x128xf32>
      %212 = vector.broadcast %211 : vector<1x1x1x128xf32> to vector<1x4x16x128xf32>
      %213 = arith.mulf %208, %212 : vector<1x4x16x128xf32>
      %214 = arith.addf %207, %213 : vector<1x4x16x128xf32>
      %c4_i32_80 = arith.constant 4 : i32
      %215 = arith.addi %8, %c4_i32_80 : i32
      %c0_81 = arith.constant 0 : index
      %216 = arith.index_cast %215 : i32 to index
      %c0_82 = arith.constant 0 : index
      %c0_83 = arith.constant 0 : index
      %217 = vector.load %arg6[%c0_81, %216, %c0_82, %c0_83] : memref<1x14x16x128xf32, #tpu.memory_space<vmem>>, vector<1x4x16x128xf32>
      %c3_i32_84 = arith.constant 3 : i32
      %218 = tpu.dynamic_rotate %217 by %c3_i32_84 dim 2 : vector<1x4x16x128xf32>, i32 -> vector<1x4x16x128xf32>
      %c28 = arith.constant 28 : index
      %c0_85 = arith.constant 0 : index
      %219 = vector.load %arg3[%c28, %c0_85] : memref<49x128xf32, #tpu.memory_space<vmem>>, vector<1x128xf32>
      %220 = vector.shape_cast %219 : vector<1x128xf32> to vector<128xf32>
      %221 = vector.shape_cast %220 : vector<128xf32> to vector<1x1x1x128xf32>
      %222 = vector.broadcast %221 : vector<1x1x1x128xf32> to vector<1x4x16x128xf32>
      %223 = arith.mulf %218, %222 : vector<1x4x16x128xf32>
      %224 = arith.addf %214, %223 : vector<1x4x16x128xf32>
      %c2_i32_86 = arith.constant 2 : i32
      %225 = tpu.dynamic_rotate %217 by %c2_i32_86 dim 2 : vector<1x4x16x128xf32>, i32 -> vector<1x4x16x128xf32>
      %c29 = arith.constant 29 : index
      %c0_87 = arith.constant 0 : index
      %226 = vector.load %arg3[%c29, %c0_87] : memref<49x128xf32, #tpu.memory_space<vmem>>, vector<1x128xf32>
      %227 = vector.shape_cast %226 : vector<1x128xf32> to vector<128xf32>
      %228 = vector.shape_cast %227 : vector<128xf32> to vector<1x1x1x128xf32>
      %229 = vector.broadcast %228 : vector<1x1x1x128xf32> to vector<1x4x16x128xf32>
      %230 = arith.mulf %225, %229 : vector<1x4x16x128xf32>
      %231 = arith.addf %224, %230 : vector<1x4x16x128xf32>
      %c1_i32_88 = arith.constant 1 : i32
      %232 = tpu.dynamic_rotate %217 by %c1_i32_88 dim 2 : vector<1x4x16x128xf32>, i32 -> vector<1x4x16x128xf32>
      %c30 = arith.constant 30 : index
      %c0_89 = arith.constant 0 : index
      %233 = vector.load %arg3[%c30, %c0_89] : memref<49x128xf32, #tpu.memory_space<vmem>>, vector<1x128xf32>
      %234 = vector.shape_cast %233 : vector<1x128xf32> to vector<128xf32>
      %235 = vector.shape_cast %234 : vector<128xf32> to vector<1x1x1x128xf32>
      %236 = vector.broadcast %235 : vector<1x1x1x128xf32> to vector<1x4x16x128xf32>
      %237 = arith.mulf %232, %236 : vector<1x4x16x128xf32>
      %238 = arith.addf %231, %237 : vector<1x4x16x128xf32>
      %c31 = arith.constant 31 : index
      %c0_90 = arith.constant 0 : index
      %239 = vector.load %arg3[%c31, %c0_90] : memref<49x128xf32, #tpu.memory_space<vmem>>, vector<1x128xf32>
      %240 = vector.shape_cast %239 : vector<1x128xf32> to vector<128xf32>
      %241 = vector.shape_cast %240 : vector<128xf32> to vector<1x1x1x128xf32>
      %242 = vector.broadcast %241 : vector<1x1x1x128xf32> to vector<1x4x16x128xf32>
      %243 = arith.mulf %217, %242 : vector<1x4x16x128xf32>
      %244 = arith.addf %238, %243 : vector<1x4x16x128xf32>
      %c15_i32_91 = arith.constant 15 : i32
      %245 = tpu.dynamic_rotate %217 by %c15_i32_91 dim 2 : vector<1x4x16x128xf32>, i32 -> vector<1x4x16x128xf32>
      %c32 = arith.constant 32 : index
      %c0_92 = arith.constant 0 : index
      %246 = vector.load %arg3[%c32, %c0_92] : memref<49x128xf32, #tpu.memory_space<vmem>>, vector<1x128xf32>
      %247 = vector.shape_cast %246 : vector<1x128xf32> to vector<128xf32>
      %248 = vector.shape_cast %247 : vector<128xf32> to vector<1x1x1x128xf32>
      %249 = vector.broadcast %248 : vector<1x1x1x128xf32> to vector<1x4x16x128xf32>
      %250 = arith.mulf %245, %249 : vector<1x4x16x128xf32>
      %251 = arith.addf %244, %250 : vector<1x4x16x128xf32>
      %c14_i32_93 = arith.constant 14 : i32
      %252 = tpu.dynamic_rotate %217 by %c14_i32_93 dim 2 : vector<1x4x16x128xf32>, i32 -> vector<1x4x16x128xf32>
      %c33 = arith.constant 33 : index
      %c0_94 = arith.constant 0 : index
      %253 = vector.load %arg3[%c33, %c0_94] : memref<49x128xf32, #tpu.memory_space<vmem>>, vector<1x128xf32>
      %254 = vector.shape_cast %253 : vector<1x128xf32> to vector<128xf32>
      %255 = vector.shape_cast %254 : vector<128xf32> to vector<1x1x1x128xf32>
      %256 = vector.broadcast %255 : vector<1x1x1x128xf32> to vector<1x4x16x128xf32>
      %257 = arith.mulf %252, %256 : vector<1x4x16x128xf32>
      %258 = arith.addf %251, %257 : vector<1x4x16x128xf32>
      %c13_i32_95 = arith.constant 13 : i32
      %259 = tpu.dynamic_rotate %217 by %c13_i32_95 dim 2 : vector<1x4x16x128xf32>, i32 -> vector<1x4x16x128xf32>
      %c34 = arith.constant 34 : index
      %c0_96 = arith.constant 0 : index
      %260 = vector.load %arg3[%c34, %c0_96] : memref<49x128xf32, #tpu.memory_space<vmem>>, vector<1x128xf32>
      %261 = vector.shape_cast %260 : vector<1x128xf32> to vector<128xf32>
      %262 = vector.shape_cast %261 : vector<128xf32> to vector<1x1x1x128xf32>
      %263 = vector.broadcast %262 : vector<1x1x1x128xf32> to vector<1x4x16x128xf32>
      %264 = arith.mulf %259, %263 : vector<1x4x16x128xf32>
      %265 = arith.addf %258, %264 : vector<1x4x16x128xf32>
      %c5_i32 = arith.constant 5 : i32
      %266 = arith.addi %8, %c5_i32 : i32
      %c0_97 = arith.constant 0 : index
      %267 = arith.index_cast %266 : i32 to index
      %c0_98 = arith.constant 0 : index
      %c0_99 = arith.constant 0 : index
      %268 = vector.load %arg6[%c0_97, %267, %c0_98, %c0_99] : memref<1x14x16x128xf32, #tpu.memory_space<vmem>>, vector<1x4x16x128xf32>
      %c3_i32_100 = arith.constant 3 : i32
      %269 = tpu.dynamic_rotate %268 by %c3_i32_100 dim 2 : vector<1x4x16x128xf32>, i32 -> vector<1x4x16x128xf32>
      %c35 = arith.constant 35 : index
      %c0_101 = arith.constant 0 : index
      %270 = vector.load %arg3[%c35, %c0_101] : memref<49x128xf32, #tpu.memory_space<vmem>>, vector<1x128xf32>
      %271 = vector.shape_cast %270 : vector<1x128xf32> to vector<128xf32>
      %272 = vector.shape_cast %271 : vector<128xf32> to vector<1x1x1x128xf32>
      %273 = vector.broadcast %272 : vector<1x1x1x128xf32> to vector<1x4x16x128xf32>
      %274 = arith.mulf %269, %273 : vector<1x4x16x128xf32>
      %275 = arith.addf %265, %274 : vector<1x4x16x128xf32>
      %c2_i32_102 = arith.constant 2 : i32
      %276 = tpu.dynamic_rotate %268 by %c2_i32_102 dim 2 : vector<1x4x16x128xf32>, i32 -> vector<1x4x16x128xf32>
      %c36 = arith.constant 36 : index
      %c0_103 = arith.constant 0 : index
      %277 = vector.load %arg3[%c36, %c0_103] : memref<49x128xf32, #tpu.memory_space<vmem>>, vector<1x128xf32>
      %278 = vector.shape_cast %277 : vector<1x128xf32> to vector<128xf32>
      %279 = vector.shape_cast %278 : vector<128xf32> to vector<1x1x1x128xf32>
      %280 = vector.broadcast %279 : vector<1x1x1x128xf32> to vector<1x4x16x128xf32>
      %281 = arith.mulf %276, %280 : vector<1x4x16x128xf32>
      %282 = arith.addf %275, %281 : vector<1x4x16x128xf32>
      %c1_i32_104 = arith.constant 1 : i32
      %283 = tpu.dynamic_rotate %268 by %c1_i32_104 dim 2 : vector<1x4x16x128xf32>, i32 -> vector<1x4x16x128xf32>
      %c37 = arith.constant 37 : index
      %c0_105 = arith.constant 0 : index
      %284 = vector.load %arg3[%c37, %c0_105] : memref<49x128xf32, #tpu.memory_space<vmem>>, vector<1x128xf32>
      %285 = vector.shape_cast %284 : vector<1x128xf32> to vector<128xf32>
      %286 = vector.shape_cast %285 : vector<128xf32> to vector<1x1x1x128xf32>
      %287 = vector.broadcast %286 : vector<1x1x1x128xf32> to vector<1x4x16x128xf32>
      %288 = arith.mulf %283, %287 : vector<1x4x16x128xf32>
      %289 = arith.addf %282, %288 : vector<1x4x16x128xf32>
      %c38 = arith.constant 38 : index
      %c0_106 = arith.constant 0 : index
      %290 = vector.load %arg3[%c38, %c0_106] : memref<49x128xf32, #tpu.memory_space<vmem>>, vector<1x128xf32>
      %291 = vector.shape_cast %290 : vector<1x128xf32> to vector<128xf32>
      %292 = vector.shape_cast %291 : vector<128xf32> to vector<1x1x1x128xf32>
      %293 = vector.broadcast %292 : vector<1x1x1x128xf32> to vector<1x4x16x128xf32>
      %294 = arith.mulf %268, %293 : vector<1x4x16x128xf32>
      %295 = arith.addf %289, %294 : vector<1x4x16x128xf32>
      %c15_i32_107 = arith.constant 15 : i32
      %296 = tpu.dynamic_rotate %268 by %c15_i32_107 dim 2 : vector<1x4x16x128xf32>, i32 -> vector<1x4x16x128xf32>
      %c39 = arith.constant 39 : index
      %c0_108 = arith.constant 0 : index
      %297 = vector.load %arg3[%c39, %c0_108] : memref<49x128xf32, #tpu.memory_space<vmem>>, vector<1x128xf32>
      %298 = vector.shape_cast %297 : vector<1x128xf32> to vector<128xf32>
      %299 = vector.shape_cast %298 : vector<128xf32> to vector<1x1x1x128xf32>
      %300 = vector.broadcast %299 : vector<1x1x1x128xf32> to vector<1x4x16x128xf32>
      %301 = arith.mulf %296, %300 : vector<1x4x16x128xf32>
      %302 = arith.addf %295, %301 : vector<1x4x16x128xf32>
      %c14_i32_109 = arith.constant 14 : i32
      %303 = tpu.dynamic_rotate %268 by %c14_i32_109 dim 2 : vector<1x4x16x128xf32>, i32 -> vector<1x4x16x128xf32>
      %c40 = arith.constant 40 : index
      %c0_110 = arith.constant 0 : index
      %304 = vector.load %arg3[%c40, %c0_110] : memref<49x128xf32, #tpu.memory_space<vmem>>, vector<1x128xf32>
      %305 = vector.shape_cast %304 : vector<1x128xf32> to vector<128xf32>
      %306 = vector.shape_cast %305 : vector<128xf32> to vector<1x1x1x128xf32>
      %307 = vector.broadcast %306 : vector<1x1x1x128xf32> to vector<1x4x16x128xf32>
      %308 = arith.mulf %303, %307 : vector<1x4x16x128xf32>
      %309 = arith.addf %302, %308 : vector<1x4x16x128xf32>
      %c13_i32_111 = arith.constant 13 : i32
      %310 = tpu.dynamic_rotate %268 by %c13_i32_111 dim 2 : vector<1x4x16x128xf32>, i32 -> vector<1x4x16x128xf32>
      %c41 = arith.constant 41 : index
      %c0_112 = arith.constant 0 : index
      %311 = vector.load %arg3[%c41, %c0_112] : memref<49x128xf32, #tpu.memory_space<vmem>>, vector<1x128xf32>
      %312 = vector.shape_cast %311 : vector<1x128xf32> to vector<128xf32>
      %313 = vector.shape_cast %312 : vector<128xf32> to vector<1x1x1x128xf32>
      %314 = vector.broadcast %313 : vector<1x1x1x128xf32> to vector<1x4x16x128xf32>
      %315 = arith.mulf %310, %314 : vector<1x4x16x128xf32>
      %316 = arith.addf %309, %315 : vector<1x4x16x128xf32>
      %c6_i32 = arith.constant 6 : i32
      %317 = arith.addi %8, %c6_i32 : i32
      %c0_113 = arith.constant 0 : index
      %318 = arith.index_cast %317 : i32 to index
      %c0_114 = arith.constant 0 : index
      %c0_115 = arith.constant 0 : index
      %319 = vector.load %arg6[%c0_113, %318, %c0_114, %c0_115] : memref<1x14x16x128xf32, #tpu.memory_space<vmem>>, vector<1x4x16x128xf32>
      %c3_i32_116 = arith.constant 3 : i32
      %320 = tpu.dynamic_rotate %319 by %c3_i32_116 dim 2 : vector<1x4x16x128xf32>, i32 -> vector<1x4x16x128xf32>
      %c42 = arith.constant 42 : index
      %c0_117 = arith.constant 0 : index
      %321 = vector.load %arg3[%c42, %c0_117] : memref<49x128xf32, #tpu.memory_space<vmem>>, vector<1x128xf32>
      %322 = vector.shape_cast %321 : vector<1x128xf32> to vector<128xf32>
      %323 = vector.shape_cast %322 : vector<128xf32> to vector<1x1x1x128xf32>
      %324 = vector.broadcast %323 : vector<1x1x1x128xf32> to vector<1x4x16x128xf32>
      %325 = arith.mulf %320, %324 : vector<1x4x16x128xf32>
      %326 = arith.addf %316, %325 : vector<1x4x16x128xf32>
      %c2_i32_118 = arith.constant 2 : i32
      %327 = tpu.dynamic_rotate %319 by %c2_i32_118 dim 2 : vector<1x4x16x128xf32>, i32 -> vector<1x4x16x128xf32>
      %c43 = arith.constant 43 : index
      %c0_119 = arith.constant 0 : index
      %328 = vector.load %arg3[%c43, %c0_119] : memref<49x128xf32, #tpu.memory_space<vmem>>, vector<1x128xf32>
      %329 = vector.shape_cast %328 : vector<1x128xf32> to vector<128xf32>
      %330 = vector.shape_cast %329 : vector<128xf32> to vector<1x1x1x128xf32>
      %331 = vector.broadcast %330 : vector<1x1x1x128xf32> to vector<1x4x16x128xf32>
      %332 = arith.mulf %327, %331 : vector<1x4x16x128xf32>
      %333 = arith.addf %326, %332 : vector<1x4x16x128xf32>
      %c1_i32_120 = arith.constant 1 : i32
      %334 = tpu.dynamic_rotate %319 by %c1_i32_120 dim 2 : vector<1x4x16x128xf32>, i32 -> vector<1x4x16x128xf32>
      %c44 = arith.constant 44 : index
      %c0_121 = arith.constant 0 : index
      %335 = vector.load %arg3[%c44, %c0_121] : memref<49x128xf32, #tpu.memory_space<vmem>>, vector<1x128xf32>
      %336 = vector.shape_cast %335 : vector<1x128xf32> to vector<128xf32>
      %337 = vector.shape_cast %336 : vector<128xf32> to vector<1x1x1x128xf32>
      %338 = vector.broadcast %337 : vector<1x1x1x128xf32> to vector<1x4x16x128xf32>
      %339 = arith.mulf %334, %338 : vector<1x4x16x128xf32>
      %340 = arith.addf %333, %339 : vector<1x4x16x128xf32>
      %c45 = arith.constant 45 : index
      %c0_122 = arith.constant 0 : index
      %341 = vector.load %arg3[%c45, %c0_122] : memref<49x128xf32, #tpu.memory_space<vmem>>, vector<1x128xf32>
      %342 = vector.shape_cast %341 : vector<1x128xf32> to vector<128xf32>
      %343 = vector.shape_cast %342 : vector<128xf32> to vector<1x1x1x128xf32>
      %344 = vector.broadcast %343 : vector<1x1x1x128xf32> to vector<1x4x16x128xf32>
      %345 = arith.mulf %319, %344 : vector<1x4x16x128xf32>
      %346 = arith.addf %340, %345 : vector<1x4x16x128xf32>
      %c15_i32_123 = arith.constant 15 : i32
      %347 = tpu.dynamic_rotate %319 by %c15_i32_123 dim 2 : vector<1x4x16x128xf32>, i32 -> vector<1x4x16x128xf32>
      %c46 = arith.constant 46 : index
      %c0_124 = arith.constant 0 : index
      %348 = vector.load %arg3[%c46, %c0_124] : memref<49x128xf32, #tpu.memory_space<vmem>>, vector<1x128xf32>
      %349 = vector.shape_cast %348 : vector<1x128xf32> to vector<128xf32>
      %350 = vector.shape_cast %349 : vector<128xf32> to vector<1x1x1x128xf32>
      %351 = vector.broadcast %350 : vector<1x1x1x128xf32> to vector<1x4x16x128xf32>
      %352 = arith.mulf %347, %351 : vector<1x4x16x128xf32>
      %353 = arith.addf %346, %352 : vector<1x4x16x128xf32>
      %c14_i32_125 = arith.constant 14 : i32
      %354 = tpu.dynamic_rotate %319 by %c14_i32_125 dim 2 : vector<1x4x16x128xf32>, i32 -> vector<1x4x16x128xf32>
      %c47 = arith.constant 47 : index
      %c0_126 = arith.constant 0 : index
      %355 = vector.load %arg3[%c47, %c0_126] : memref<49x128xf32, #tpu.memory_space<vmem>>, vector<1x128xf32>
      %356 = vector.shape_cast %355 : vector<1x128xf32> to vector<128xf32>
      %357 = vector.shape_cast %356 : vector<128xf32> to vector<1x1x1x128xf32>
      %358 = vector.broadcast %357 : vector<1x1x1x128xf32> to vector<1x4x16x128xf32>
      %359 = arith.mulf %354, %358 : vector<1x4x16x128xf32>
      %360 = arith.addf %353, %359 : vector<1x4x16x128xf32>
      %c13_i32_127 = arith.constant 13 : i32
      %361 = tpu.dynamic_rotate %319 by %c13_i32_127 dim 2 : vector<1x4x16x128xf32>, i32 -> vector<1x4x16x128xf32>
      %c48 = arith.constant 48 : index
      %c0_128 = arith.constant 0 : index
      %362 = vector.load %arg3[%c48, %c0_128] : memref<49x128xf32, #tpu.memory_space<vmem>>, vector<1x128xf32>
      %363 = vector.shape_cast %362 : vector<1x128xf32> to vector<128xf32>
      %364 = vector.shape_cast %363 : vector<128xf32> to vector<1x1x1x128xf32>
      %365 = vector.broadcast %364 : vector<1x1x1x128xf32> to vector<1x4x16x128xf32>
      %366 = arith.mulf %361, %365 : vector<1x4x16x128xf32>
      %367 = arith.addf %360, %366 : vector<1x4x16x128xf32>
      %368 = vector.extract_strided_slice %367 {offsets = [0, 0, 0, 0], sizes = [1, 4, 8, 128], strides = [1, 1, 1, 1]} : vector<1x4x16x128xf32> to vector<1x4x8x128xf32>
      %c0_129 = arith.constant 0 : index
      %369 = arith.index_cast %8 : i32 to index
      %c0_130 = arith.constant 0 : index
      %c0_131 = arith.constant 0 : index
      %370 = vector.load %arg5[%c0_129, %369, %c0_130, %c0_131] : memref<1x8x8x128xf32, #tpu.memory_space<vmem>>, vector<1x4x8x128xf32>
      tpu.vector_store %arg5[%c0_129, %369, %c0_130, %c0_131], %368 {strides = array<i32>} : memref<1x8x8x128xf32, #tpu.memory_space<vmem>>, vector<1x4x8x128xf32>,
    }
    %c2_i32_12 = arith.constant 2 : i32
    return
  }
  func.func @transform_0(%arg0: i32, %arg1: i32) -> (i32, i32, i32, i32) {
    %c0_i32 = arith.constant 0 : i32
    %c0_i32_0 = arith.constant 0 : i32
    %c0_i32_1 = arith.constant 0 : i32
    return %arg1, %c0_i32, %c0_i32_0, %arg0 : i32, i32, i32, i32
  }
  func.func @transform_1(%arg0: i32, %arg1: i32) -> (i32, i32) {
    %c0_i32 = arith.constant 0 : i32
    %c0_i32_0 = arith.constant 0 : i32
    return %c0_i32, %arg0 : i32, i32
  }
  func.func @transform_2(%arg0: i32, %arg1: i32) -> (i32, i32) {
    %c0_i32 = arith.constant 0 : i32
    %c0_i32_0 = arith.constant 0 : i32
    return %c0_i32, %arg0 : i32, i32
  }
  func.func @transform_3(%arg0: i32, %arg1: i32) -> (i32, i32, i32, i32) {
    %c0_i32 = arith.constant 0 : i32
    %c0_i32_0 = arith.constant 0 : i32
    %c0_i32_1 = arith.constant 0 : i32
    return %arg1, %c0_i32, %c0_i32_0, %arg0 : i32, i32, i32, i32
  }
}

</mosaic_0001>

<llo_original>
// kernel: ppeg_forward.1
$region0: #{ppeg_forward.1}
  #allocation0 [shape = 'u32[]', space=smem, size = 0x4, offset = 0x4, fixed_abs, tag = 'smem constant byte address 0x4 - core index']
  #allocation1 [shape = 'u32[144,128]{1,0:T(1,128)}', space=vmem, size = 0x12000, scoped, tag = 'internal scratch']
  #allocation2 [shape = 'f32[1,14,16,128]{3,2,1,0:T(8,128)}', space=vmem, size = 0x1c000, scoped, tag = 'scratch operand']
  %s0 = inlined_call_operand.vmem [shape: f32[2,8,8,128], index: 0, kind: input, shape index: {}]
  %s1 = inlined_call_operand.vmem [shape: f32[49,128], index: 1, kind: input, shape index: {}]
  %s2 = inlined_call_operand.vmem [shape: f32[1,128], index: 2, kind: input, shape index: {}]
  %s3 = inlined_call_operand.vmem [shape: f32[2,8,8,128], index: 3, kind: output, shape index: {}]
  %s4 = sld [smem:[#allocation0]]
  $region52: #{ppeg_forward.1} parent=0
    _
  %s6 = ssub.s32 1, %s4
  %s7 = scalar_select 0, %s6, %s4
  loop: start=0, step=1, limit=4
  $region2: #{ppeg_forward.1} parent=0 // loop_pre_header
    _
  $region3: #{ppeg_forward.1} parent=0 // loop_header
    %s9 = sphi 0, %s13
    %p10 = scmp.ge.s32.totalorder %s9, 4
    %s16 = sphi 0, %s28
    %s17 = sphi 0, %s24
    %s18 = sphi 0, %s16
    %s19 = sphi 0, %s17
    %s20 = sphi 0, %s18
    %s21 = sphi 0, %s19
    %s33 = sphi 0, %s35
    %s36 = sphi 0, %s33
    %s37 = sphi 0, %s36
    %s53 = sphi 0, %s37
    %s59 = sphi 0, %s61
    %s62 = sphi 0, %s59
    %s63 = sphi 0, %s62
    %s79 = sphi 0, %s63
    %s85 = sphi 0, %s87
    %s88 = sphi 0, %s85
    %s89 = sphi 0, %s88
    %s105 = sphi 0, %s89
    %s113 = sphi 0, %s115
    %s116 = sphi 0, %s113
    %s117 = sphi 0, %s116
    %s133 = sphi 0, %s117
  $region4: #{ppeg_forward.1} parent=0 // loop_header_branch
    %12 = sbr.rel (%p10) target = $region8
  $region5: #{ppeg_forward.1} parent=0 // loop_body
    %s14 = ssub.s32 %s9, 1
    %s15 = ssub.s32 %s9, 2
    %s22 = sadd.s32 1, %s17
    %p23 = scmp.ge.s32.totalorder %s22, 2
    %s24 = scalar_select %p23, 0, %s22
    %s25 = sadd.s32 1, %s16
    %s26 = scalar_select %p23, %s25, %s16
    %p27 = scmp.ge.s32.totalorder %s26, 1
    %s28 = scalar_select %p27, 0, %s26
    %s29 = ssub.s32 %s17, %s24
    %s30 = ssub.s32 %s16, %s28
    %s31 = sor.u32 %s29, %s30
    %p32 = scmp.eq.s32.totalorder %s31, 0
    %s34 = sadd.s32 %s33, 1
    %s35 = scalar_select %p32, %s33, %s34
    %p38 = pneg %p32
    %p39 = scmp.eq.s32.totalorder %s9, 1
    %p40 = por %p38, %p39
    %p41 = scmp.ne.s32.totalorder %s33, %s36
    %p42 = scmp.eq.s32.totalorder %s9, 0
    %p43 = por %p41, %p42
    %p44 = scmp.ne.s32.totalorder %s33, %s36
    %p45 = scmp.eq.s32.totalorder %s14, 1
    %p46 = por %p44, %p45
    %p47 = scmp.ne.s32.totalorder %s36, %s37
    %p48 = scmp.eq.s32.totalorder %s14, 0
    %p49 = por %p47, %p48
    %p50 = scmp.ne.s32.totalorder %s36, %s37
    %p51 = scmp.eq.s32.totalorder %s15, 1
    %p52 = por %p50, %p51
    %p54 = scmp.ne.s32.totalorder %s37, %s53
    %p55 = scmp.eq.s32.totalorder %s15, 0
    %p56 = por %p54, %p55
    %s57 = ssub.s32 %s16, %s28
    %p58 = scmp.eq.s32.totalorder %s57, 0
    %s60 = sadd.s32 %s59, 1
    %s61 = scalar_select %p58, %s59, %s60
    %p64 = pneg %p58
    %p65 = scmp.eq.s32.totalorder %s9, 1
    %p66 = por %p64, %p65
    %p67 = scmp.ne.s32.totalorder %s59, %s62
    %p68 = scmp.eq.s32.totalorder %s9, 0
    %p69 = por %p67, %p68
    %p70 = scmp.ne.s32.totalorder %s59, %s62
    %p71 = scmp.eq.s32.totalorder %s14, 1
    %p72 = por %p70, %p71
    %p73 = scmp.ne.s32.totalorder %s62, %s63
    %p74 = scmp.eq.s32.totalorder %s14, 0
    %p75 = por %p73, %p74
    %p76 = scmp.ne.s32.totalorder %s62, %s63
    %p77 = scmp.eq.s32.totalorder %s15, 1
    %p78 = por %p76, %p77
    %p80 = scmp.ne.s32.totalorder %s63, %s79
    %p81 = scmp.eq.s32.totalorder %s15, 0
    %p82 = por %p80, %p81
    %s83 = ssub.s32 %s16, %s28
    %p84 = scmp.eq.s32.totalorder %s83, 0
    %s86 = sadd.s32 %s85, 1
    %s87 = scalar_select %p84, %s85, %s86
    %p90 = pneg %p84
    %p91 = scmp.eq.s32.totalorder %s9, 1
    %p92 = por %p90, %p91
    %p93 = scmp.ne.s32.totalorder %s85, %s88
    %p94 = scmp.eq.s32.totalorder %s9, 0
    %p95 = por %p93, %p94
    %p96 = scmp.ne.s32.totalorder %s85, %s88
    %p97 = scmp.eq.s32.totalorder %s14, 1
    %p98 = por %p96, %p97
    %p99 = scmp.ne.s32.totalorder %s88, %s89
    %p100 = scmp.eq.s32.totalorder %s14, 0
    %p101 = por %p99, %p100
    %p102 = scmp.ne.s32.totalorder %s88, %s89
    %p103 = scmp.eq.s32.totalorder %s15, 1
    %p104 = por %p102, %p103
    %p106 = scmp.ne.s32.totalorder %s89, %s105
    %p107 = scmp.eq.s32.totalorder %s15, 0
    %p108 = por %p106, %p107
    %s109 = ssub.s32 %s17, %s24
    %s110 = ssub.s32 %s16, %s28
    %s111 = sor.u32 %s109, %s110
    %p112 = scmp.eq.s32.totalorder %s111, 0
    %s114 = sadd.s32 %s113, 1
    %s115 = scalar_select %p112, %s113, %s114
    %p118 = pneg %p112
    %p119 = scmp.eq.s32.totalorder %s9, 1
    %p120 = por %p118, %p119
    %p121 = scmp.ne.s32.totalorder %s113, %s116
    %p122 = scmp.eq.s32.totalorder %s9, 0
    %p123 = por %p121, %p122
    %p124 = scmp.ne.s32.totalorder %s113, %s116
    %p125 = scmp.eq.s32.totalorder %s14, 1
    %p126 = por %p124, %p125
    %p127 = scmp.ne.s32.totalorder %s116, %s117
    %p128 = scmp.eq.s32.totalorder %s14, 0
    %p129 = por %p127, %p128
    %p130 = scmp.ne.s32.totalorder %s116, %s117
    %p131 = scmp.eq.s32.totalorder %s15, 1
    %p132 = por %p130, %p131
    %p134 = scmp.ne.s32.totalorder %s117, %s133
    %p135 = scmp.eq.s32.totalorder %s15, 0
    %p136 = por %p134, %p135
    %p137 = scmp.le.s32.totalorder 1, %s9
    %p138 = scmp.lt.s32.totalorder %s9, 3
    %p139 = pnand %p137, %p138
    %p140 = pneg %p139
    // Predicated region
    $region9: #{ppeg_forward.1} parent=5 // pred_check
      _
    $region10: #{ppeg_forward.1} parent=5 // pred_check_branch
      %142 = sbr.rel (%p139) target = $region12
    $region11: #{ppeg_forward.1} parent=5 // pred_region
      %s143 = ssub.s32 %s9, 1
      // Predicated region
      $region13: #{ppeg_forward.1} parent=11 // pred_check
        %p144 = pneg %p75
      $region14: #{ppeg_forward.1} parent=11 // pred_check_branch
        %146 = sbr.rel (%p144) target = $region16
      $region15: #{ppeg_forward.1} parent=11 // pred_region
        %p147 = scmp.lt.s32.totalorder %s18, 0
        %s148 = scalar_select %p147, %s18, 0
        %s149 = smul.addr %s148, 8
        %s150 = scalar_lea.vmem %s1, %s149
      $region16: #{ppeg_forward.1} parent=11 // pred_fallthru
        _
      // Predicated region
      $region17: #{ppeg_forward.1} parent=11 // pred_check
        %p151 = pneg %p101
      $region18: #{ppeg_forward.1} parent=11 // pred_check_branch
        %153 = sbr.rel (%p151) target = $region20
      $region19: #{ppeg_forward.1} parent=11 // pred_region
        %p154 = scmp.lt.s32.totalorder %s18, 0
        %s155 = scalar_select %p154, %s18, 0
        %s156 = scalar_lea.vmem %s2, %s155
      $region20: #{ppeg_forward.1} parent=11 // pred_fallthru
        _
    $region12: #{ppeg_forward.1} parent=5 // pred_fallthru
      _
    %p157 = scmp.lt.s32.totalorder %s9, 2
    // Predicated region
    $region21: #{ppeg_forward.1} parent=5 // pred_check
      %p158 = pneg %p157
    $region22: #{ppeg_forward.1} parent=5 // pred_check_branch
      %160 = sbr.rel (%p158) target = $region24
    $region23: #{ppeg_forward.1} parent=5 // pred_region
      // Predicated region
      $region25: #{ppeg_forward.1} parent=23 // pred_check
        %p161 = pneg %p43
      $region26: #{ppeg_forward.1} parent=23 // pred_check_branch
        %163 = sbr.rel (%p161) target = $region28
      $region27: #{ppeg_forward.1} parent=23 // pred_region
        %p164 = scmp.lt.s32.totalorder %s17, 1
        %s165 = scalar_select %p164, %s17, 1
        %p166 = scmp.lt.s32.totalorder %s16, 0
        %s167 = scalar_select %p166, %s16, 0
        %s168 = smul.addr %s165, 8
        %s169 = sadd.s32 %s167, %s168
        %s170 = smul.addr %s169, 8
        %s171 = scalar_lea.vmem %s0, %s170
      $region28: #{ppeg_forward.1} parent=23 // pred_fallthru
        _
    $region24: #{ppeg_forward.1} parent=5 // pred_fallthru
      _
    %p172 = scmp.le.s32.totalorder 1, %s9
    %p173 = scmp.lt.s32.totalorder %s9, 3
    %p174 = pnand %p172, %p173
    %p175 = pneg %p174
    // Predicated region
    $region29: #{ppeg_forward.1} parent=5 // pred_check
      _
    $region30: #{ppeg_forward.1} parent=5 // pred_check_branch
      %177 = sbr.rel (%p174) target = $region32
    $region31: #{ppeg_forward.1} parent=5 // pred_region
      %s178 = ssub.s32 %s9, 1
      %p179 = scmp.lt.s32.totalorder %s19, 1
      %s180 = scalar_select %p179, %s19, 1
      %p181 = scmp.lt.s32.totalorder %s18, 0
      %s182 = scalar_select %p181, %s18, 0
      %s183 = smul.addr %s180, 8
      %s184 = sadd.s32 %s182, %s183
      %s185 = smul.addr %s184, 8
      %s186 = scalar_lea.vmem %s0, %s185
      %p187 = pneg %p49
      %p188 = pneg %p46
      %p189 = scmp.lt.s32.totalorder %s18, 0
      %s190 = scalar_select %p189, %s18, 0
      %s191 = smul.addr %s190, 8
      %s192 = scalar_lea.vmem %s1, %s191
      %p193 = pneg %p75
      %p194 = pneg %p72
      %p195 = scmp.lt.s32.totalorder %s18, 0
      %s196 = scalar_select %p195, %s18, 0
      %s197 = scalar_lea.vmem %s2, %s196
      %p198 = pneg %p101
      %p199 = pneg %p98
      %p200 = pneg %p129
      %p201 = pneg %p126
      %p202 = scmp.lt.s32.totalorder %s19, 1
      %s203 = scalar_select %p202, %s19, 1
      %p204 = scmp.lt.s32.totalorder %s18, 0
      %s205 = scalar_select %p204, %s18, 0
      %s206 = smul.addr %s203, 8
      %s207 = sadd.s32 %s205, %s206
      %s208 = smul.addr %s207, 8
      %s209 = scalar_lea.vmem %s3, %s208
      %p210 = scmp.lt.s32.totalorder %s19, 1
      %s211 = scalar_select %p210, %s19, 1
      %p212 = scmp.lt.s32.totalorder %s18, 0
      %s213 = scalar_select %p212, %s18, 0
      %s214 = smul.addr %s211, 8
      %s215 = sadd.s32 %s213, %s214
      %s216 = smul.addr %s215, 8
      %s217 = scalar_lea.vmem %s0, %s216
      %p218 = scmp.lt.s32.totalorder %s18, 0
      %s219 = scalar_select %p218, %s18, 0
      %s220 = smul.addr %s219, 8
      %s221 = scalar_lea.vmem %s1, %s220
      %p222 = scmp.lt.s32.totalorder %s18, 0
      %s223 = scalar_select %p222, %s18, 0
      %s224 = scalar_lea.vmem %s2, %s223
      %p225 = scmp.lt.s32.totalorder %s19, 1
      %s226 = scalar_select %p225, %s19, 1
      %p227 = scmp.lt.s32.totalorder %s18, 0
      %s228 = scalar_select %p227, %s18, 0
      %s229 = smul.addr %s226, 8
      %s230 = sadd.s32 %s228, %s229
      %s231 = smul.addr %s230, 8
      %s232 = scalar_lea.vmem %s3, %s231
      %233 = vst [vmem:[#allocation2] sm:$0xff] 0.0
      %234 = vst [vmem:[#allocation2 + $0x8] sm:$0xff] 0.0
      %235 = vst [vmem:[#allocation2 + $0x10] sm:$0xff] 0.0
      %236 = vst [vmem:[#allocation2 + $0x18] sm:$0xff] 0.0
      %237 = vst [vmem:[#allocation2 + $0x20] sm:$0xff] 0.0
      %238 = vst [vmem:[#allocation2 + $0x28] sm:$0xff] 0.0
      %239 = vst [vmem:[#allocation2 + $0x30] sm:$0xff] 0.0
      %240 = vst [vmem:[#allocation2 + $0x38] sm:$0xff] 0.0
      %241 = vst [vmem:[#allocation2 + $0x40] sm:$0xff] 0.0
      %242 = vst [vmem:[#allocation2 + $0x48] sm:$0xff] 0.0
      %243 = vst [vmem:[#allocation2 + $0x50] sm:$0xff] 0.0
      %244 = vst [vmem:[#allocation2 + $0x58] sm:$0xff] 0.0
      %245 = vst [vmem:[#allocation2 + $0x60] sm:$0xff] 0.0
      %246 = vst [vmem:[#allocation2 + $0x68] sm:$0xff] 0.0
      %247 = vst [vmem:[#allocation2 + $0x70] sm:$0xff] 0.0
      %248 = vst [vmem:[#allocation2 + $0x78] sm:$0xff] 0.0
      %249 = vst [vmem:[#allocation2 + $0x80] sm:$0xff] 0.0
      %250 = vst [vmem:[#allocation2 + $0x88] sm:$0xff] 0.0
      %251 = vst [vmem:[#allocation2 + $0x90] sm:$0xff] 0.0
      %252 = vst [vmem:[#allocation2 + $0x98] sm:$0xff] 0.0
      %253 = vst [vmem:[#allocation2 + $0xa0] sm:$0xff] 0.0
      %254 = vst [vmem:[#allocation2 + $0xa8] sm:$0xff] 0.0
      %255 = vst [vmem:[#allocation2 + $0xb0] sm:$0xff] 0.0
      %256 = vst [vmem:[#allocation2 + $0xb8] sm:$0xff] 0.0
      %257 = vst [vmem:[#allocation2 + $0xc0] sm:$0xff] 0.0
      %258 = vst [vmem:[#allocation2 + $0xc8] sm:$0xff] 0.0
      %259 = vst [vmem:[#allocation2 + $0xd0] sm:$0xff] 0.0
      %260 = vst [vmem:[#allocation2 + $0xd8] sm:$0xff] 0.0
      %v261 = vld [vmem:[%s217] sm:$0xff]
      %v262 = vld [vmem:[%s217 + $0x8] sm:$0xff]
      %v263 = vld [vmem:[%s217 + $0x10] sm:$0xff]
      %v264 = vld [vmem:[%s217 + $0x18] sm:$0xff]
      %v265 = vld [vmem:[%s217 + $0x20] sm:$0xff]
      %v266 = vld [vmem:[%s217 + $0x28] sm:$0xff]
      %v267 = vld [vmem:[%s217 + $0x30] sm:$0xff]
      %v268 = vld [vmem:[%s217 + $0x38] sm:$0xff]
      %s269 = scalar_lea.vmem [#allocation2], 48
      %270 = vst [vmem:[%s269] sm:$0xff] %v261
      %271 = vst [vmem:[%s269 + $0x10] sm:$0xff] %v262
      %272 = vst [vmem:[%s269 + $0x20] sm:$0xff] %v263
      %273 = vst [vmem:[%s269 + $0x30] sm:$0xff] %v264
      %274 = vst [vmem:[%s269 + $0x40] sm:$0xff] %v265
      %275 = vst [vmem:[%s269 + $0x50] sm:$0xff] %v266
      %276 = vst [vmem:[%s269 + $0x60] sm:$0xff] %v267
      %277 = vst [vmem:[%s269 + $0x70] sm:$0xff] %v268
      %v278 = vld [vmem:[%s224] sm:$0x1]
      loop: start=0, step=1, limit=2
      $region33: #{ppeg_forward.1} parent=31 // loop_pre_header
        _
      $region34: #{ppeg_forward.1} parent=31 // loop_header
        %s280 = sphi 0, %s284
        %p281 = scmp.ge.s32.totalorder %s280, 2
      $region35: #{ppeg_forward.1} parent=31 // loop_header_branch
        %283 = sbr.rel (%p281) target = $region39
      $region36: #{ppeg_forward.1} parent=31 // loop_body
        %s285 = smul.u32 %s280, 4
        %p286 = scmp.lt.s32.totalorder %s285, 4
        %s287 = scalar_select %p286, %s285, 4
        %v289 = vlaneseq
        %v290 = vshrl.u32 %v289, 7
        %v291 = vsub.s32 0, %v290
        %v292 = vrot.slane %v278, %v291
        %s294 = smul.u32 %s287, 16
        %s295 = scalar_lea.vmem [#allocation2], %s294
        %v296 = vld [vmem:[%s295] sm:$0xff]
        %v297 = vld [vmem:[%s295 + $0x8] sm:$0xff]
        %v298 = vld [vmem:[%s295 + $0x10] sm:$0xff]
        %v299 = vld [vmem:[%s295 + $0x18] sm:$0xff]
        %v300 = vld [vmem:[%s295 + $0x20] sm:$0xff]
        %v301 = vld [vmem:[%s295 + $0x28] sm:$0xff]
        %v302 = vld [vmem:[%s295 + $0x30] sm:$0xff]
        %v303 = vld [vmem:[%s295 + $0x38] sm:$0xff]
        %v304 = vrot.slane %v296, 5
        %v305 = vrot.slane %v298, 5
        %v306 = vrot.slane %v300, 5
        %v307 = vrot.slane %v302, 5
        %v308 = vrot.slane %v297, 5
        %v309 = vrot.slane %v299, 5
        %v310 = vrot.slane %v301, 5
        %v311 = vrot.slane %v303, 5
        %v312 = vlaneseq
        %v313 = vshrl.u32 %v312, 7
        %vm314 = vcmp.lt.s32.totalorder %v313, 3
        %v315 = vsel %vm314, %v308, %v304
        %v316 = vsel %vm314, %v309, %v305
        %v317 = vsel %vm314, %v310, %v306
        %v318 = vsel %vm314, %v311, %v307
        %v319 = vld [vmem:[%s221] sm:$0x1]
        %v320 = vlaneseq
        %v321 = vshrl.u32 %v320, 7
        %v322 = vsub.s32 0, %v321
        %v323 = vrot.slane %v319, %v322
        %v324 = vmul.f32 %v315, %v323
        %v325 = vmul.f32 %v316, %v323
        %v326 = vmul.f32 %v317, %v323
        %v327 = vmul.f32 %v318, %v323
        %v328 = vadd.f32 %v292, %v324
        %v329 = vadd.f32 %v292, %v325
        %v330 = vadd.f32 %v292, %v326
        %v331 = vadd.f32 %v292, %v327
        %v332 = vrot.slane %v296, 6
        %v333 = vrot.slane %v298, 6
        %v334 = vrot.slane %v300, 6
        %v335 = vrot.slane %v302, 6
        %v336 = vrot.slane %v297, 6
        %v337 = vrot.slane %v299, 6
        %v338 = vrot.slane %v301, 6
        %v339 = vrot.slane %v303, 6
        %vm340 = vcmp.lt.s32.totalorder %v313, 2
        %v341 = vsel %vm340, %v336, %v332
        %v342 = vsel %vm340, %v337, %v333
        %v343 = vsel %vm340, %v338, %v334
        %v344 = vsel %vm340, %v339, %v335
        %v345 = vld [vmem:[%s221 + $0x1] sm:$0x1]
        %v346 = vlaneseq
        %v347 = vshrl.u32 %v346, 7
        %v348 = vsub.s32 0, %v347
        %v349 = vrot.slane %v345, %v348
        %v350 = vmul.f32 %v341, %v349
        %v351 = vmul.f32 %v342, %v349
        %v352 = vmul.f32 %v343, %v349
        %v353 = vmul.f32 %v344, %v349
        %v354 = vadd.f32 %v328, %v350
        %v355 = vadd.f32 %v329, %v351
        %v356 = vadd.f32 %v330, %v352
        %v357 = vadd.f32 %v331, %v353
        %v358 = vrot.slane %v296, 7
        %v359 = vrot.slane %v298, 7
        %v360 = vrot.slane %v300, 7
        %v361 = vrot.slane %v302, 7
        %v362 = vrot.slane %v297, 7
        %v363 = vrot.slane %v299, 7
        %v364 = vrot.slane %v301, 7
        %v365 = vrot.slane %v303, 7
        %vm366 = vcmp.lt.s32.totalorder %v313, 1
        %v367 = vsel %vm366, %v362, %v358
        %v368 = vsel %vm366, %v363, %v359
        %v369 = vsel %vm366, %v364, %v360
        %v370 = vsel %vm366, %v365, %v361
        %v371 = vld [vmem:[%s221 + $0x2] sm:$0x1]
        %v372 = vlaneseq
        %v373 = vshrl.u32 %v372, 7
        %v374 = vsub.s32 0, %v373
        %v375 = vrot.slane %v371, %v374
        %v376 = vmul.f32 %v367, %v375
        %v377 = vmul.f32 %v368, %v375
        %v378 = vmul.f32 %v369, %v375
        %v379 = vmul.f32 %v370, %v375
        %v380 = vadd.f32 %v354, %v376
        %v381 = vadd.f32 %v355, %v377
        %v382 = vadd.f32 %v356, %v378
        %v383 = vadd.f32 %v357, %v379
        %v384 = vld [vmem:[%s221 + $0x3] sm:$0x1]
        %v385 = vlaneseq
        %v386 = vshrl.u32 %v385, 7
        %v387 = vsub.s32 0, %v386
        %v388 = vrot.slane %v384, %v387
        %v389 = vmul.f32 %v296, %v388
        %v390 = vmul.f32 %v298, %v388
        %v391 = vmul.f32 %v300, %v388
        %v392 = vmul.f32 %v302, %v388
        %v393 = vadd.f32 %v380, %v389
        %v394 = vadd.f32 %v381, %v390
        %v395 = vadd.f32 %v382, %v391
        %v396 = vadd.f32 %v383, %v392
        %v397 = vrot.slane %v296, 1
        %v398 = vrot.slane %v298, 1
        %v399 = vrot.slane %v300, 1
        %v400 = vrot.slane %v302, 1
        %v401 = vrot.slane %v297, 1
        %v402 = vrot.slane %v299, 1
        %v403 = vrot.slane %v301, 1
        %v404 = vrot.slane %v303, 1
        %vm405 = vcmp.lt.s32.totalorder %v313, 7
        %v406 = vsel %vm405, %v397, %v401
        %v407 = vsel %vm405, %v398, %v402
        %v408 = vsel %vm405, %v399, %v403
        %v409 = vsel %vm405, %v400, %v404
        %v410 = vld [vmem:[%s221 + $0x4] sm:$0x1]
        %v411 = vlaneseq
        %v412 = vshrl.u32 %v411, 7
        %v413 = vsub.s32 0, %v412
        %v414 = vrot.slane %v410, %v413
        %v415 = vmul.f32 %v406, %v414
        %v416 = vmul.f32 %v407, %v414
        %v417 = vmul.f32 %v408, %v414
        %v418 = vmul.f32 %v409, %v414
        %v419 = vadd.f32 %v393, %v415
        %v420 = vadd.f32 %v394, %v416
        %v421 = vadd.f32 %v395, %v417
        %v422 = vadd.f32 %v396, %v418
        %v423 = vrot.slane %v296, 2
        %v424 = vrot.slane %v298, 2
        %v425 = vrot.slane %v300, 2
        %v426 = vrot.slane %v302, 2
        %v427 = vrot.slane %v297, 2
        %v428 = vrot.slane %v299, 2
        %v429 = vrot.slane %v301, 2
        %v430 = vrot.slane %v303, 2
        %vm431 = vcmp.lt.s32.totalorder %v313, 6
        %v432 = vsel %vm431, %v423, %v427
        %v433 = vsel %vm431, %v424, %v428
        %v434 = vsel %vm431, %v425, %v429
        %v435 = vsel %vm431, %v426, %v430
        %v436 = vld [vmem:[%s221 + $0x5] sm:$0x1]
        %v437 = vlaneseq
        %v438 = vshrl.u32 %v437, 7
        %v439 = vsub.s32 0, %v438
        %v440 = vrot.slane %v436, %v439
        %v441 = vmul.f32 %v432, %v440
        %v442 = vmul.f32 %v433, %v440
        %v443 = vmul.f32 %v434, %v440
        %v444 = vmul.f32 %v435, %v440
        %v445 = vadd.f32 %v419, %v441
        %v446 = vadd.f32 %v420, %v442
        %v447 = vadd.f32 %v421, %v443
        %v448 = vadd.f32 %v422, %v444
        %v449 = vrot.slane %v296, 3
        %v450 = vrot.slane %v298, 3
        %v451 = vrot.slane %v300, 3
        %v452 = vrot.slane %v302, 3
        %v453 = vrot.slane %v297, 3
        %v454 = vrot.slane %v299, 3
        %v455 = vrot.slane %v301, 3
        %v456 = vrot.slane %v303, 3
        %vm457 = vcmp.lt.s32.totalorder %v313, 5
        %v458 = vsel %vm457, %v449, %v453
        %v459 = vsel %vm457, %v450, %v454
        %v460 = vsel %vm457, %v451, %v455
        %v461 = vsel %vm457, %v452, %v456
        %v462 = vld [vmem:[%s221 + $0x6] sm:$0x1]
        %v463 = vlaneseq
        %v464 = vshrl.u32 %v463, 7
        %v465 = vsub.s32 0, %v464
        %v466 = vrot.slane %v462, %v465
        %v467 = vmul.f32 %v458, %v466
        %v468 = vmul.f32 %v459, %v466
        %v469 = vmul.f32 %v460, %v466
        %v470 = vmul.f32 %v461, %v466
        %v471 = vadd.f32 %v445, %v467
        %v472 = vadd.f32 %v446, %v468
        %v473 = vadd.f32 %v447, %v469
        %v474 = vadd.f32 %v448, %v470
        %s475 = sadd.s32 %s287, 1
        %s476 = smul.u32 %s475, 16
        %s477 = scalar_lea.vmem [#allocation2], %s476
        %v478 = vld [vmem:[%s477] sm:$0xff]
        %v479 = vld [vmem:[%s477 + $0x8] sm:$0xff]
        %v480 = vld [vmem:[%s477 + $0x10] sm:$0xff]
        %v481 = vld [vmem:[%s477 + $0x18] sm:$0xff]
        %v482 = vld [vmem:[%s477 + $0x20] sm:$0xff]
        %v483 = vld [vmem:[%s477 + $0x28] sm:$0xff]
        %v484 = vld [vmem:[%s477 + $0x30] sm:$0xff]
        %v485 = vld [vmem:[%s477 + $0x38] sm:$0xff]
        %v486 = vrot.slane %v478, 5
        %v487 = vrot.slane %v480, 5
        %v488 = vrot.slane %v482, 5
        %v489 = vrot.slane %v484, 5
        %v490 = vrot.slane %v479, 5
        %v491 = vrot.slane %v481, 5
        %v492 = vrot.slane %v483, 5
        %v493 = vrot.slane %v485, 5
        %v494 = vsel %vm314, %v490, %v486
        %v495 = vsel %vm314, %v491, %v487
        %v496 = vsel %vm314, %v492, %v488
        %v497 = vsel %vm314, %v493, %v489
        %v498 = vld [vmem:[%s221 + $0x7] sm:$0x1]
        %v499 = vlaneseq
        %v500 = vshrl.u32 %v499, 7
        %v501 = vsub.s32 0, %v500
        %v502 = vrot.slane %v498, %v501
        %v503 = vmul.f32 %v494, %v502
        %v504 = vmul.f32 %v495, %v502
        %v505 = vmul.f32 %v496, %v502
        %v506 = vmul.f32 %v497, %v502
        %v507 = vadd.f32 %v471, %v503
        %v508 = vadd.f32 %v472, %v504
        %v509 = vadd.f32 %v473, %v505
        %v510 = vadd.f32 %v474, %v506
        %v511 = vrot.slane %v478, 6
        %v512 = vrot.slane %v480, 6
        %v513 = vrot.slane %v482, 6
        %v514 = vrot.slane %v484, 6
        %v515 = vrot.slane %v479, 6
        %v516 = vrot.slane %v481, 6
        %v517 = vrot.slane %v483, 6
        %v518 = vrot.slane %v485, 6
        %v519 = vsel %vm340, %v515, %v511
        %v520 = vsel %vm340, %v516, %v512
        %v521 = vsel %vm340, %v517, %v513
        %v522 = vsel %vm340, %v518, %v514
        %v523 = vld [vmem:[%s221 + $0x8] sm:$0x1]
        %v524 = vlaneseq
        %v525 = vshrl.u32 %v524, 7
        %v526 = vsub.s32 0, %v525
        %v527 = vrot.slane %v523, %v526
        %v528 = vmul.f32 %v519, %v527
        %v529 = vmul.f32 %v520, %v527
        %v530 = vmul.f32 %v521, %v527
        %v531 = vmul.f32 %v522, %v527
        %v532 = vadd.f32 %v507, %v528
        %v533 = vadd.f32 %v508, %v529
        %v534 = vadd.f32 %v509, %v530
        %v535 = vadd.f32 %v510, %v531
        %v536 = vrot.slane %v478, 7
        %v537 = vrot.slane %v480, 7
        %v538 = vrot.slane %v482, 7
        %v539 = vrot.slane %v484, 7
        %v540 = vrot.slane %v479, 7
        %v541 = vrot.slane %v481, 7
        %v542 = vrot.slane %v483, 7
        %v543 = vrot.slane %v485, 7
        %v544 = vsel %vm366, %v540, %v536
        %v545 = vsel %vm366, %v541, %v537
        %v546 = vsel %vm366, %v542, %v538
        %v547 = vsel %vm366, %v543, %v539
        %v548 = vld [vmem:[%s221 + $0x9] sm:$0x1]
        %v549 = vlaneseq
        %v550 = vshrl.u32 %v549, 7
        %v551 = vsub.s32 0, %v550
        %v552 = vrot.slane %v548, %v551
        %v553 = vmul.f32 %v544, %v552
        %v554 = vmul.f32 %v545, %v552
        %v555 = vmul.f32 %v546, %v552
        %v556 = vmul.f32 %v547, %v552
        %v557 = vadd.f32 %v532, %v553
        %v558 = vadd.f32 %v533, %v554
        %v559 = vadd.f32 %v534, %v555
        %v560 = vadd.f32 %v535, %v556
        %v561 = vld [vmem:[%s221 + $0xa] sm:$0x1]
        %v562 = vlaneseq
        %v563 = vshrl.u32 %v562, 7
        %v564 = vsub.s32 0, %v563
        %v565 = vrot.slane %v561, %v564
        %v566 = vmul.f32 %v478, %v565
        %v567 = vmul.f32 %v480, %v565
        %v568 = vmul.f32 %v482, %v565
        %v569 = vmul.f32 %v484, %v565
        %v570 = vadd.f32 %v557, %v566
        %v571 = vadd.f32 %v558, %v567
        %v572 = vadd.f32 %v559, %v568
        %v573 = vadd.f32 %v560, %v569
        %v574 = vrot.slane %v478, 1
        %v575 = vrot.slane %v480, 1
        %v576 = vrot.slane %v482, 1
        %v577 = vrot.slane %v484, 1
        %v578 = vrot.slane %v479, 1
        %v579 = vrot.slane %v481, 1
        %v580 = vrot.slane %v483, 1
        %v581 = vrot.slane %v485, 1
        %v582 = vsel %vm405, %v574, %v578
        %v583 = vsel %vm405, %v575, %v579
        %v584 = vsel %vm405, %v576, %v580
        %v585 = vsel %vm405, %v577, %v581
        %v586 = vld [vmem:[%s221 + $0xb] sm:$0x1]
        %v587 = vlaneseq
        %v588 = vshrl.u32 %v587, 7
        %v589 = vsub.s32 0, %v588
        %v590 = vrot.slane %v586, %v589
        %v591 = vmul.f32 %v582, %v590
        %v592 = vmul.f32 %v583, %v590
        %v593 = vmul.f32 %v584, %v590
        %v594 = vmul.f32 %v585, %v590
        %v595 = vadd.f32 %v570, %v591
        %v596 = vadd.f32 %v571, %v592
        %v597 = vadd.f32 %v572, %v593
        %v598 = vadd.f32 %v573, %v594
        %v599 = vrot.slane %v478, 2
        %v600 = vrot.slane %v480, 2
        %v601 = vrot.slane %v482, 2
        %v602 = vrot.slane %v484, 2
        %v603 = vrot.slane %v479, 2
        %v604 = vrot.slane %v481, 2
        %v605 = vrot.slane %v483, 2
        %v606 = vrot.slane %v485, 2
        %v607 = vsel %vm431, %v599, %v603
        %v608 = vsel %vm431, %v600, %v604
        %v609 = vsel %vm431, %v601, %v605
        %v610 = vsel %vm431, %v602, %v606
        %v611 = vld [vmem:[%s221 + $0xc] sm:$0x1]
        %v612 = vlaneseq
        %v613 = vshrl.u32 %v612, 7
        %v614 = vsub.s32 0, %v613
        %v615 = vrot.slane %v611, %v614
        %v616 = vmul.f32 %v607, %v615
        %v617 = vmul.f32 %v608, %v615
        %v618 = vmul.f32 %v609, %v615
        %v619 = vmul.f32 %v610, %v615
        %v620 = vadd.f32 %v595, %v616
        %v621 = vadd.f32 %v596, %v617
        %v622 = vadd.f32 %v597, %v618
        %v623 = vadd.f32 %v598, %v619
        %v624 = vrot.slane %v478, 3
        %v625 = vrot.slane %v480, 3
        %v626 = vrot.slane %v482, 3
        %v627 = vrot.slane %v484, 3
        %v628 = vrot.slane %v479, 3
        %v629 = vrot.slane %v481, 3
        %v630 = vrot.slane %v483, 3
        %v631 = vrot.slane %v485, 3
        %v632 = vsel %vm457, %v624, %v628
        %v633 = vsel %vm457, %v625, %v629
        %v634 = vsel %vm457, %v626, %v630
        %v635 = vsel %vm457, %v627, %v631
        %v636 = vld [vmem:[%s221 + $0xd] sm:$0x1]
        %v637 = vlaneseq
        %v638 = vshrl.u32 %v637, 7
        %v639 = vsub.s32 0, %v638
        %v640 = vrot.slane %v636, %v639
        %v641 = vmul.f32 %v632, %v640
        %v642 = vmul.f32 %v633, %v640
        %v643 = vmul.f32 %v634, %v640
        %v644 = vmul.f32 %v635, %v640
        %v645 = vadd.f32 %v620, %v641
        %v646 = vadd.f32 %v621, %v642
        %v647 = vadd.f32 %v622, %v643
        %v648 = vadd.f32 %v623, %v644
        %s649 = sadd.s32 %s287, 2
        %s650 = smul.u32 %s649, 16
        %s651 = scalar_lea.vmem [#allocation2], %s650
        %v652 = vld [vmem:[%s651] sm:$0xff]
        %v653 = vld [vmem:[%s651 + $0x8] sm:$0xff]
        %v654 = vld [vmem:[%s651 + $0x10] sm:$0xff]
        %v655 = vld [vmem:[%s651 + $0x18] sm:$0xff]
        %v656 = vld [vmem:[%s651 + $0x20] sm:$0xff]
        %v657 = vld [vmem:[%s651 + $0x28] sm:$0xff]
        %v658 = vld [vmem:[%s651 + $0x30] sm:$0xff]
        %v659 = vld [vmem:[%s651 + $0x38] sm:$0xff]
        %v660 = vrot.slane %v652, 5
        %v661 = vrot.slane %v654, 5
        %v662 = vrot.slane %v656, 5
        %v663 = vrot.slane %v658, 5
        %v664 = vrot.slane %v653, 5
        %v665 = vrot.slane %v655, 5
        %v666 = vrot.slane %v657, 5
        %v667 = vrot.slane %v659, 5
        %v668 = vsel %vm314, %v664, %v660
        %v669 = vsel %vm314, %v665, %v661
        %v670 = vsel %vm314, %v666, %v662
        %v671 = vsel %vm314, %v667, %v663
        %v672 = vld [vmem:[%s221 + $0xe] sm:$0x1]
        %v673 = vlaneseq
        %v674 = vshrl.u32 %v673, 7
        %v675 = vsub.s32 0, %v674
        %v676 = vrot.slane %v672, %v675
        %v677 = vmul.f32 %v668, %v676
        %v678 = vmul.f32 %v669, %v676
        %v679 = vmul.f32 %v670, %v676
        %v680 = vmul.f32 %v671, %v676
        %v681 = vadd.f32 %v645, %v677
        %v682 = vadd.f32 %v646, %v678
        %v683 = vadd.f32 %v647, %v679
        %v684 = vadd.f32 %v648, %v680
        %v685 = vrot.slane %v652, 6
        %v686 = vrot.slane %v654, 6
        %v687 = vrot.slane %v656, 6
        %v688 = vrot.slane %v658, 6
        %v689 = vrot.slane %v653, 6
        %v690 = vrot.slane %v655, 6
        %v691 = vrot.slane %v657, 6
        %v692 = vrot.slane %v659, 6
        %v693 = vsel %vm340, %v689, %v685
        %v694 = vsel %vm340, %v690, %v686
        %v695 = vsel %vm340, %v691, %v687
        %v696 = vsel %vm340, %v692, %v688
        %v697 = vld [vmem:[%s221 + $0xf] sm:$0x1]
        %v698 = vlaneseq
        %v699 = vshrl.u32 %v698, 7
        %v700 = vsub.s32 0, %v699
        %v701 = vrot.slane %v697, %v700
        %v702 = vmul.f32 %v693, %v701
        %v703 = vmul.f32 %v694, %v701
        %v704 = vmul.f32 %v695, %v701
        %v705 = vmul.f32 %v696, %v701
        %v706 = vadd.f32 %v681, %v702
        %v707 = vadd.f32 %v682, %v703
        %v708 = vadd.f32 %v683, %v704
        %v709 = vadd.f32 %v684, %v705
        %v710 = vrot.slane %v652, 7
        %v711 = vrot.slane %v654, 7
        %v712 = vrot.slane %v656, 7
        %v713 = vrot.slane %v658, 7
        %v714 = vrot.slane %v653, 7
        %v715 = vrot.slane %v655, 7
        %v716 = vrot.slane %v657, 7
        %v717 = vrot.slane %v659, 7
        %v718 = vsel %vm366, %v714, %v710
        %v719 = vsel %vm366, %v715, %v711
        %v720 = vsel %vm366, %v716, %v712
        %v721 = vsel %vm366, %v717, %v713
        %v722 = vld [vmem:[%s221 + $0x10] sm:$0x1]
        %v723 = vlaneseq
        %v724 = vshrl.u32 %v723, 7
        %v725 = vsub.s32 0, %v724
        %v726 = vrot.slane %v722, %v725
        %v727 = vmul.f32 %v718, %v726
        %v728 = vmul.f32 %v719, %v726
        %v729 = vmul.f32 %v720, %v726
        %v730 = vmul.f32 %v721, %v726
        %v731 = vadd.f32 %v706, %v727
        %v732 = vadd.f32 %v707, %v728
        %v733 = vadd.f32 %v708, %v729
        %v734 = vadd.f32 %v709, %v730
        %v735 = vld [vmem:[%s221 + $0x11] sm:$0x1]
        %v736 = vlaneseq
        %v737 = vshrl.u32 %v736, 7
        %v738 = vsub.s32 0, %v737
        %v739 = vrot.slane %v735, %v738
        %v740 = vmul.f32 %v652, %v739
        %v741 = vmul.f32 %v654, %v739
        %v742 = vmul.f32 %v656, %v739
        %v743 = vmul.f32 %v658, %v739
        %v744 = vadd.f32 %v731, %v740
        %v745 = vadd.f32 %v732, %v741
        %v746 = vadd.f32 %v733, %v742
        %v747 = vadd.f32 %v734, %v743
        %v748 = vrot.slane %v652, 1
        %v749 = vrot.slane %v654, 1
        %v750 = vrot.slane %v656, 1
        %v751 = vrot.slane %v658, 1
        %v752 = vrot.slane %v653, 1
        %v753 = vrot.slane %v655, 1
        %v754 = vrot.slane %v657, 1
        %v755 = vrot.slane %v659, 1
        %v756 = vsel %vm405, %v748, %v752
        %v757 = vsel %vm405, %v749, %v753
        %v758 = vsel %vm405, %v750, %v754
        %v759 = vsel %vm405, %v751, %v755
        %v760 = vld [vmem:[%s221 + $0x12] sm:$0x1]
        %v761 = vlaneseq
        %v762 = vshrl.u32 %v761, 7
        %v763 = vsub.s32 0, %v762
        %v764 = vrot.slane %v760, %v763
        %v765 = vmul.f32 %v756, %v764
        %v766 = vmul.f32 %v757, %v764
        %v767 = vmul.f32 %v758, %v764
        %v768 = vmul.f32 %v759, %v764
        %v769 = vadd.f32 %v744, %v765
        %v770 = vadd.f32 %v745, %v766
        %v771 = vadd.f32 %v746, %v767
        %v772 = vadd.f32 %v747, %v768
        %v773 = vrot.slane %v652, 2
        %v774 = vrot.slane %v654, 2
        %v775 = vrot.slane %v656, 2
        %v776 = vrot.slane %v658, 2
        %v777 = vrot.slane %v653, 2
        %v778 = vrot.slane %v655, 2
        %v779 = vrot.slane %v657, 2
        %v780 = vrot.slane %v659, 2
        %v781 = vsel %vm431, %v773, %v777
        %v782 = vsel %vm431, %v774, %v778
        %v783 = vsel %vm431, %v775, %v779
        %v784 = vsel %vm431, %v776, %v780
        %v785 = vld [vmem:[%s221 + $0x13] sm:$0x1]
        %v786 = vlaneseq
        %v787 = vshrl.u32 %v786, 7
        %v788 = vsub.s32 0, %v787
        %v789 = vrot.slane %v785, %v788
        %v790 = vmul.f32 %v781, %v789
        %v791 = vmul.f32 %v782, %v789
        %v792 = vmul.f32 %v783, %v789
        %v793 = vmul.f32 %v784, %v789
        %v794 = vadd.f32 %v769, %v790
        %v795 = vadd.f32 %v770, %v791
        %v796 = vadd.f32 %v771, %v792
        %v797 = vadd.f32 %v772, %v793
        %v798 = vrot.slane %v652, 3
        %v799 = vrot.slane %v654, 3
        %v800 = vrot.slane %v656, 3
        %v801 = vrot.slane %v658, 3
        %v802 = vrot.slane %v653, 3
        %v803 = vrot.slane %v655, 3
        %v804 = vrot.slane %v657, 3
        %v805 = vrot.slane %v659, 3
        %v806 = vsel %vm457, %v798, %v802
        %v807 = vsel %vm457, %v799, %v803
        %v808 = vsel %vm457, %v800, %v804
        %v809 = vsel %vm457, %v801, %v805
        %v810 = vld [vmem:[%s221 + $0x14] sm:$0x1]
        %v811 = vlaneseq
        %v812 = vshrl.u32 %v811, 7
        %v813 = vsub.s32 0, %v812
        %v814 = vrot.slane %v810, %v813
        %v815 = vmul.f32 %v806, %v814
        %v816 = vmul.f32 %v807, %v814
        %v817 = vmul.f32 %v808, %v814
        %v818 = vmul.f32 %v809, %v814
        %v819 = vadd.f32 %v794, %v815
        %v820 = vadd.f32 %v795, %v816
        %v821 = vadd.f32 %v796, %v817
        %v822 = vadd.f32 %v797, %v818
        %s823 = sadd.s32 %s287, 3
        %s824 = smul.u32 %s823, 16
        %s825 = scalar_lea.vmem [#allocation2], %s824
        %v826 = vld [vmem:[%s825] sm:$0xff]
        %v827 = vld [vmem:[%s825 + $0x8] sm:$0xff]
        %v828 = vld [vmem:[%s825 + $0x10] sm:$0xff]
        %v829 = vld [vmem:[%s825 + $0x18] sm:$0xff]
        %v830 = vld [vmem:[%s825 + $0x20] sm:$0xff]
        %v831 = vld [vmem:[%s825 + $0x28] sm:$0xff]
        %v832 = vld [vmem:[%s825 + $0x30] sm:$0xff]
        %v833 = vld [vmem:[%s825 + $0x38] sm:$0xff]
        %v834 = vrot.slane %v826, 5
        %v835 = vrot.slane %v828, 5
        %v836 = vrot.slane %v830, 5
        %v837 = vrot.slane %v832, 5
        %v838 = vrot.slane %v827, 5
        %v839 = vrot.slane %v829, 5
        %v840 = vrot.slane %v831, 5
        %v841 = vrot.slane %v833, 5
        %v842 = vsel %vm314, %v838, %v834
        %v843 = vsel %vm314, %v839, %v835
        %v844 = vsel %vm314, %v840, %v836
        %v845 = vsel %vm314, %v841, %v837
        %v846 = vld [vmem:[%s221 + $0x15] sm:$0x1]
        %v847 = vlaneseq
        %v848 = vshrl.u32 %v847, 7
        %v849 = vsub.s32 0, %v848
        %v850 = vrot.slane %v846, %v849
        %v851 = vmul.f32 %v842, %v850
        %v852 = vmul.f32 %v843, %v850
        %v853 = vmul.f32 %v844, %v850
        %v854 = vmul.f32 %v845, %v850
        %v855 = vadd.f32 %v819, %v851
        %v856 = vadd.f32 %v820, %v852
        %v857 = vadd.f32 %v821, %v853
        %v858 = vadd.f32 %v822, %v854
        %v859 = vrot.slane %v826, 6
        %v860 = vrot.slane %v828, 6
        %v861 = vrot.slane %v830, 6
        %v862 = vrot.slane %v832, 6
        %v863 = vrot.slane %v827, 6
        %v864 = vrot.slane %v829, 6
        %v865 = vrot.slane %v831, 6
        %v866 = vrot.slane %v833, 6
        %v867 = vsel %vm340, %v863, %v859
        %v868 = vsel %vm340, %v864, %v860
        %v869 = vsel %vm340, %v865, %v861
        %v870 = vsel %vm340, %v866, %v862
        %v871 = vld [vmem:[%s221 + $0x16] sm:$0x1]
        %v872 = vlaneseq
        %v873 = vshrl.u32 %v872, 7
        %v874 = vsub.s32 0, %v873
        %v875 = vrot.slane %v871, %v874
        %v876 = vmul.f32 %v867, %v875
        %v877 = vmul.f32 %v868, %v875
        %v878 = vmul.f32 %v869, %v875
        %v879 = vmul.f32 %v870, %v875
        %v880 = vadd.f32 %v855, %v876
        %v881 = vadd.f32 %v856, %v877
        %v882 = vadd.f32 %v857, %v878
        %v883 = vadd.f32 %v858, %v879
        %v884 = vrot.slane %v826, 7
        %v885 = vrot.slane %v828, 7
        %v886 = vrot.slane %v830, 7
        %v887 = vrot.slane %v832, 7
        %v888 = vrot.slane %v827, 7
        %v889 = vrot.slane %v829, 7
        %v890 = vrot.slane %v831, 7
        %v891 = vrot.slane %v833, 7
        %v892 = vsel %vm366, %v888, %v884
        %v893 = vsel %vm366, %v889, %v885
        %v894 = vsel %vm366, %v890, %v886
        %v895 = vsel %vm366, %v891, %v887
        %v896 = vld [vmem:[%s221 + $0x17] sm:$0x1]
        %v897 = vlaneseq
        %v898 = vshrl.u32 %v897, 7
        %v899 = vsub.s32 0, %v898
        %v900 = vrot.slane %v896, %v899
        %v901 = vmul.f32 %v892, %v900
        %v902 = vmul.f32 %v893, %v900
        %v903 = vmul.f32 %v894, %v900
        %v904 = vmul.f32 %v895, %v900
        %v905 = vadd.f32 %v880, %v901
        %v906 = vadd.f32 %v881, %v902
        %v907 = vadd.f32 %v882, %v903
        %v908 = vadd.f32 %v883, %v904
        %v909 = vld [vmem:[%s221 + $0x18] sm:$0x1]
        %v910 = vlaneseq
        %v911 = vshrl.u32 %v910, 7
        %v912 = vsub.s32 0, %v911
        %v913 = vrot.slane %v909, %v912
        %v914 = vmul.f32 %v826, %v913
        %v915 = vmul.f32 %v828, %v913
        %v916 = vmul.f32 %v830, %v913
        %v917 = vmul.f32 %v832, %v913
        %v918 = vadd.f32 %v905, %v914
        %v919 = vadd.f32 %v906, %v915
        %v920 = vadd.f32 %v907, %v916
        %v921 = vadd.f32 %v908, %v917
        %v922 = vrot.slane %v826, 1
        %v923 = vrot.slane %v828, 1
        %v924 = vrot.slane %v830, 1
        %v925 = vrot.slane %v832, 1
        %v926 = vrot.slane %v827, 1
        %v927 = vrot.slane %v829, 1
        %v928 = vrot.slane %v831, 1
        %v929 = vrot.slane %v833, 1
        %v930 = vsel %vm405, %v922, %v926
        %v931 = vsel %vm405, %v923, %v927
        %v932 = vsel %vm405, %v924, %v928
        %v933 = vsel %vm405, %v925, %v929
        %v934 = vld [vmem:[%s221 + $0x19] sm:$0x1]
        %v935 = vlaneseq
        %v936 = vshrl.u32 %v935, 7
        %v937 = vsub.s32 0, %v936
        %v938 = vrot.slane %v934, %v937
        %v939 = vmul.f32 %v930, %v938
        %v940 = vmul.f32 %v931, %v938
        %v941 = vmul.f32 %v932, %v938
        %v942 = vmul.f32 %v933, %v938
        %v943 = vadd.f32 %v918, %v939
        %v944 = vadd.f32 %v919, %v940
        %v945 = vadd.f32 %v920, %v941
        %v946 = vadd.f32 %v921, %v942
        %v947 = vrot.slane %v826, 2
        %v948 = vrot.slane %v828, 2
        %v949 = vrot.slane %v830, 2
        %v950 = vrot.slane %v832, 2
        %v951 = vrot.slane %v827, 2
        %v952 = vrot.slane %v829, 2
        %v953 = vrot.slane %v831, 2
        %v954 = vrot.slane %v833, 2
        %v955 = vsel %vm431, %v947, %v951
        %v956 = vsel %vm431, %v948, %v952
        %v957 = vsel %vm431, %v949, %v953
        %v958 = vsel %vm431, %v950, %v954
        %v959 = vld [vmem:[%s221 + $0x1a] sm:$0x1]
        %v960 = vlaneseq
        %v961 = vshrl.u32 %v960, 7
        %v962 = vsub.s32 0, %v961
        %v963 = vrot.slane %v959, %v962
        %v964 = vmul.f32 %v955, %v963
        %v965 = vmul.f32 %v956, %v963
        %v966 = vmul.f32 %v957, %v963
        %v967 = vmul.f32 %v958, %v963
        %v968 = vadd.f32 %v943, %v964
        %v969 = vadd.f32 %v944, %v965
        %v970 = vadd.f32 %v945, %v966
        %v971 = vadd.f32 %v946, %v967
        %v972 = vrot.slane %v826, 3
        %v973 = vrot.slane %v828, 3
        %v974 = vrot.slane %v830, 3
        %v975 = vrot.slane %v832, 3
        %v976 = vrot.slane %v827, 3
        %v977 = vrot.slane %v829, 3
        %v978 = vrot.slane %v831, 3
        %v979 = vrot.slane %v833, 3
        %v980 = vsel %vm457, %v972, %v976
        %v981 = vsel %vm457, %v973, %v977
        %v982 = vsel %vm457, %v974, %v978
        %v983 = vsel %vm457, %v975, %v979
        %v984 = vld [vmem:[%s221 + $0x1b] sm:$0x1]
        %v985 = vlaneseq
        %v986 = vshrl.u32 %v985, 7
        %v987 = vsub.s32 0, %v986
        %v988 = vrot.slane %v984, %v987
        %v989 = vmul.f32 %v980, %v988
        %v990 = vmul.f32 %v981, %v988
        %v991 = vmul.f32 %v982, %v988
        %v992 = vmul.f32 %v983, %v988
        %v993 = vadd.f32 %v968, %v989
        %v994 = vadd.f32 %v969, %v990
        %v995 = vadd.f32 %v970, %v991
        %v996 = vadd.f32 %v971, %v992
        %s997 = sadd.s32 %s287, 4
        %s998 = smul.u32 %s997, 16
        %s999 = scalar_lea.vmem [#allocation2], %s998
        %v1000 = vld [vmem:[%s999] sm:$0xff]
        %v1001 = vld [vmem:[%s999 + $0x8] sm:$0xff]
        %v1002 = vld [vmem:[%s999 + $0x10] sm:$0xff]
        %v1003 = vld [vmem:[%s999 + $0x18] sm:$0xff]
        %v1004 = vld [vmem:[%s999 + $0x20] sm:$0xff]
        %v1005 = vld [vmem:[%s999 + $0x28] sm:$0xff]
        %v1006 = vld [vmem:[%s999 + $0x30] sm:$0xff]
        %v1007 = vld [vmem:[%s999 + $0x38] sm:$0xff]
        %v1008 = vrot.slane %v1000, 5
        %v1009 = vrot.slane %v1002, 5
        %v1010 = vrot.slane %v1004, 5
        %v1011 = vrot.slane %v1006, 5
        %v1012 = vrot.slane %v1001, 5
        %v1013 = vrot.slane %v1003, 5
        %v1014 = vrot.slane %v1005, 5
        %v1015 = vrot.slane %v1007, 5
        %v1016 = vsel %vm314, %v1012, %v1008
        %v1017 = vsel %vm314, %v1013, %v1009
        %v1018 = vsel %vm314, %v1014, %v1010
        %v1019 = vsel %vm314, %v1015, %v1011
        %v1020 = vld [vmem:[%s221 + $0x1c] sm:$0x1]
        %v1021 = vlaneseq
        %v1022 = vshrl.u32 %v1021, 7
        %v1023 = vsub.s32 0, %v1022
        %v1024 = vrot.slane %v1020, %v1023
        %v1025 = vmul.f32 %v1016, %v1024
        %v1026 = vmul.f32 %v1017, %v1024
        %v1027 = vmul.f32 %v1018, %v1024
        %v1028 = vmul.f32 %v1019, %v1024
        %v1029 = vadd.f32 %v993, %v1025
        %v1030 = vadd.f32 %v994, %v1026
        %v1031 = vadd.f32 %v995, %v1027
        %v1032 = vadd.f32 %v996, %v1028
        %v1033 = vrot.slane %v1000, 6
        %v1034 = vrot.slane %v1002, 6
        %v1035 = vrot.slane %v1004, 6
        %v1036 = vrot.slane %v1006, 6
        %v1037 = vrot.slane %v1001, 6
        %v1038 = vrot.slane %v1003, 6
        %v1039 = vrot.slane %v1005, 6
        %v1040 = vrot.slane %v1007, 6
        %v1041 = vsel %vm340, %v1037, %v1033
        %v1042 = vsel %vm340, %v1038, %v1034
        %v1043 = vsel %vm340, %v1039, %v1035
        %v1044 = vsel %vm340, %v1040, %v1036
        %v1045 = vld [vmem:[%s221 + $0x1d] sm:$0x1]
        %v1046 = vlaneseq
        %v1047 = vshrl.u32 %v1046, 7
        %v1048 = vsub.s32 0, %v1047
        %v1049 = vrot.slane %v1045, %v1048
        %v1050 = vmul.f32 %v1041, %v1049
        %v1051 = vmul.f32 %v1042, %v1049
        %v1052 = vmul.f32 %v1043, %v1049
        %v1053 = vmul.f32 %v1044, %v1049
        %v1054 = vadd.f32 %v1029, %v1050
        %v1055 = vadd.f32 %v1030, %v1051
        %v1056 = vadd.f32 %v1031, %v1052
        %v1057 = vadd.f32 %v1032, %v1053
        %v1058 = vrot.slane %v1000, 7
        %v1059 = vrot.slane %v1002, 7
        %v1060 = vrot.slane %v1004, 7
        %v1061 = vrot.slane %v1006, 7
        %v1062 = vrot.slane %v1001, 7
        %v1063 = vrot.slane %v1003, 7
        %v1064 = vrot.slane %v1005, 7
        %v1065 = vrot.slane %v1007, 7
        %v1066 = vsel %vm366, %v1062, %v1058
        %v1067 = vsel %vm366, %v1063, %v1059
        %v1068 = vsel %vm366, %v1064, %v1060
        %v1069 = vsel %vm366, %v1065, %v1061
        %v1070 = vld [vmem:[%s221 + $0x1e] sm:$0x1]
        %v1071 = vlaneseq
        %v1072 = vshrl.u32 %v1071, 7
        %v1073 = vsub.s32 0, %v1072
        %v1074 = vrot.slane %v1070, %v1073
        %v1075 = vmul.f32 %v1066, %v1074
        %v1076 = vmul.f32 %v1067, %v1074
        %v1077 = vmul.f32 %v1068, %v1074
        %v1078 = vmul.f32 %v1069, %v1074
        %v1079 = vadd.f32 %v1054, %v1075
        %v1080 = vadd.f32 %v1055, %v1076
        %v1081 = vadd.f32 %v1056, %v1077
        %v1082 = vadd.f32 %v1057, %v1078
        %v1083 = vld [vmem:[%s221 + $0x1f] sm:$0x1]
        %v1084 = vlaneseq
        %v1085 = vshrl.u32 %v1084, 7
        %v1086 = vsub.s32 0, %v1085
        %v1087 = vrot.slane %v1083, %v1086
        %v1088 = vmul.f32 %v1000, %v1087
        %v1089 = vmul.f32 %v1002, %v1087
        %v1090 = vmul.f32 %v1004, %v1087
        %v1091 = vmul.f32 %v1006, %v1087
        %v1092 = vadd.f32 %v1079, %v1088
        %v1093 = vadd.f32 %v1080, %v1089
        %v1094 = vadd.f32 %v1081, %v1090
        %v1095 = vadd.f32 %v1082, %v1091
        %v1096 = vrot.slane %v1000, 1
        %v1097 = vrot.slane %v1002, 1
        %v1098 = vrot.slane %v1004, 1
        %v1099 = vrot.slane %v1006, 1
        %v1100 = vrot.slane %v1001, 1
        %v1101 = vrot.slane %v1003, 1
        %v1102 = vrot.slane %v1005, 1
        %v1103 = vrot.slane %v1007, 1
        %v1104 = vsel %vm405, %v1096, %v1100
        %v1105 = vsel %vm405, %v1097, %v1101
        %v1106 = vsel %vm405, %v1098, %v1102
        %v1107 = vsel %vm405, %v1099, %v1103
        %v1108 = vld [vmem:[%s221 + $0x20] sm:$0x1]
        %v1109 = vlaneseq
        %v1110 = vshrl.u32 %v1109, 7
        %v1111 = vsub.s32 0, %v1110
        %v1112 = vrot.slane %v1108, %v1111
        %v1113 = vmul.f32 %v1104, %v1112
        %v1114 = vmul.f32 %v1105, %v1112
        %v1115 = vmul.f32 %v1106, %v1112
        %v1116 = vmul.f32 %v1107, %v1112
        %v1117 = vadd.f32 %v1092, %v1113
        %v1118 = vadd.f32 %v1093, %v1114
        %v1119 = vadd.f32 %v1094, %v1115
        %v1120 = vadd.f32 %v1095, %v1116
        %v1121 = vrot.slane %v1000, 2
        %v1122 = vrot.slane %v1002, 2
        %v1123 = vrot.slane %v1004, 2
        %v1124 = vrot.slane %v1006, 2
        %v1125 = vrot.slane %v1001, 2
        %v1126 = vrot.slane %v1003, 2
        %v1127 = vrot.slane %v1005, 2
        %v1128 = vrot.slane %v1007, 2
        %v1129 = vsel %vm431, %v1121, %v1125
        %v1130 = vsel %vm431, %v1122, %v1126
        %v1131 = vsel %vm431, %v1123, %v1127
        %v1132 = vsel %vm431, %v1124, %v1128
        %v1133 = vld [vmem:[%s221 + $0x21] sm:$0x1]
        %v1134 = vlaneseq
        %v1135 = vshrl.u32 %v1134, 7
        %v1136 = vsub.s32 0, %v1135
        %v1137 = vrot.slane %v1133, %v1136
        %v1138 = vmul.f32 %v1129, %v1137
        %v1139 = vmul.f32 %v1130, %v1137
        %v1140 = vmul.f32 %v1131, %v1137
        %v1141 = vmul.f32 %v1132, %v1137
        %v1142 = vadd.f32 %v1117, %v1138
        %v1143 = vadd.f32 %v1118, %v1139
        %v1144 = vadd.f32 %v1119, %v1140
        %v1145 = vadd.f32 %v1120, %v1141
        %v1146 = vrot.slane %v1000, 3
        %v1147 = vrot.slane %v1002, 3
        %v1148 = vrot.slane %v1004, 3
        %v1149 = vrot.slane %v1006, 3
        %v1150 = vrot.slane %v1001, 3
        %v1151 = vrot.slane %v1003, 3
        %v1152 = vrot.slane %v1005, 3
        %v1153 = vrot.slane %v1007, 3
        %v1154 = vsel %vm457, %v1146, %v1150
        %v1155 = vsel %vm457, %v1147, %v1151
        %v1156 = vsel %vm457, %v1148, %v1152
        %v1157 = vsel %vm457, %v1149, %v1153
        %v1158 = vld [vmem:[%s221 + $0x22] sm:$0x1]
        %v1159 = vlaneseq
        %v1160 = vshrl.u32 %v1159, 7
        %v1161 = vsub.s32 0, %v1160
        %v1162 = vrot.slane %v1158, %v1161
        %v1163 = vmul.f32 %v1154, %v1162
        %v1164 = vmul.f32 %v1155, %v1162
        %v1165 = vmul.f32 %v1156, %v1162
        %v1166 = vmul.f32 %v1157, %v1162
        %v1167 = vadd.f32 %v1142, %v1163
        %v1168 = vadd.f32 %v1143, %v1164
        %v1169 = vadd.f32 %v1144, %v1165
        %v1170 = vadd.f32 %v1145, %v1166
        %s1171 = sadd.s32 %s287, 5
        %s1172 = smul.u32 %s1171, 16
        %s1173 = scalar_lea.vmem [#allocation2], %s1172
        %v1174 = vld [vmem:[%s1173] sm:$0xff]
        %v1175 = vld [vmem:[%s1173 + $0x8] sm:$0xff]
        %v1176 = vld [vmem:[%s1173 + $0x10] sm:$0xff]
        %v1177 = vld [vmem:[%s1173 + $0x18] sm:$0xff]
        %v1178 = vld [vmem:[%s1173 + $0x20] sm:$0xff]
        %v1179 = vld [vmem:[%s1173 + $0x28] sm:$0xff]
        %v1180 = vld [vmem:[%s1173 + $0x30] sm:$0xff]
        %v1181 = vld [vmem:[%s1173 + $0x38] sm:$0xff]
        %v1182 = vrot.slane %v1174, 5
        %v1183 = vrot.slane %v1176, 5
        %v1184 = vrot.slane %v1178, 5
        %v1185 = vrot.slane %v1180, 5
        %v1186 = vrot.slane %v1175, 5
        %v1187 = vrot.slane %v1177, 5
        %v1188 = vrot.slane %v1179, 5
        %v1189 = vrot.slane %v1181, 5
        %v1190 = vsel %vm314, %v1186, %v1182
        %v1191 = vsel %vm314, %v1187, %v1183
        %v1192 = vsel %vm314, %v1188, %v1184
        %v1193 = vsel %vm314, %v1189, %v1185
        %v1194 = vld [vmem:[%s221 + $0x23] sm:$0x1]
        %v1195 = vlaneseq
        %v1196 = vshrl.u32 %v1195, 7
        %v1197 = vsub.s32 0, %v1196
        %v1198 = vrot.slane %v1194, %v1197
        %v1199 = vmul.f32 %v1190, %v1198
        %v1200 = vmul.f32 %v1191, %v1198
        %v1201 = vmul.f32 %v1192, %v1198
        %v1202 = vmul.f32 %v1193, %v1198
        %v1203 = vadd.f32 %v1167, %v1199
        %v1204 = vadd.f32 %v1168, %v1200
        %v1205 = vadd.f32 %v1169, %v1201
        %v1206 = vadd.f32 %v1170, %v1202
        %v1207 = vrot.slane %v1174, 6
        %v1208 = vrot.slane %v1176, 6
        %v1209 = vrot.slane %v1178, 6
        %v1210 = vrot.slane %v1180, 6
        %v1211 = vrot.slane %v1175, 6
        %v1212 = vrot.slane %v1177, 6
        %v1213 = vrot.slane %v1179, 6
        %v1214 = vrot.slane %v1181, 6
        %v1215 = vsel %vm340, %v1211, %v1207
        %v1216 = vsel %vm340, %v1212, %v1208
        %v1217 = vsel %vm340, %v1213, %v1209
        %v1218 = vsel %vm340, %v1214, %v1210
        %v1219 = vld [vmem:[%s221 + $0x24] sm:$0x1]
        %v1220 = vlaneseq
        %v1221 = vshrl.u32 %v1220, 7
        %v1222 = vsub.s32 0, %v1221
        %v1223 = vrot.slane %v1219, %v1222
        %v1224 = vmul.f32 %v1215, %v1223
        %v1225 = vmul.f32 %v1216, %v1223
        %v1226 = vmul.f32 %v1217, %v1223
        %v1227 = vmul.f32 %v1218, %v1223
        %v1228 = vadd.f32 %v1203, %v1224
        %v1229 = vadd.f32 %v1204, %v1225
        %v1230 = vadd.f32 %v1205, %v1226
        %v1231 = vadd.f32 %v1206, %v1227
        %v1232 = vrot.slane %v1174, 7
        %v1233 = vrot.slane %v1176, 7
        %v1234 = vrot.slane %v1178, 7
        %v1235 = vrot.slane %v1180, 7
        %v1236 = vrot.slane %v1175, 7
        %v1237 = vrot.slane %v1177, 7
        %v1238 = vrot.slane %v1179, 7
        %v1239 = vrot.slane %v1181, 7
        %v1240 = vsel %vm366, %v1236, %v1232
        %v1241 = vsel %vm366, %v1237, %v1233
        %v1242 = vsel %vm366, %v1238, %v1234
        %v1243 = vsel %vm366, %v1239, %v1235
        %v1244 = vld [vmem:[%s221 + $0x25] sm:$0x1]
        %v1245 = vlaneseq
        %v1246 = vshrl.u32 %v1245, 7
        %v1247 = vsub.s32 0, %v1246
        %v1248 = vrot.slane %v1244, %v1247
        %v1249 = vmul.f32 %v1240, %v1248
        %v1250 = vmul.f32 %v1241, %v1248
        %v1251 = vmul.f32 %v1242, %v1248
        %v1252 = vmul.f32 %v1243, %v1248
        %v1253 = vadd.f32 %v1228, %v1249
        %v1254 = vadd.f32 %v1229, %v1250
        %v1255 = vadd.f32 %v1230, %v1251
        %v1256 = vadd.f32 %v1231, %v1252
        %v1257 = vld [vmem:[%s221 + $0x26] sm:$0x1]
        %v1258 = vlaneseq
        %v1259 = vshrl.u32 %v1258, 7
        %v1260 = vsub.s32 0, %v1259
        %v1261 = vrot.slane %v1257, %v1260
        %v1262 = vmul.f32 %v1174, %v1261
        %v1263 = vmul.f32 %v1176, %v1261
        %v1264 = vmul.f32 %v1178, %v1261
        %v1265 = vmul.f32 %v1180, %v1261
        %v1266 = vadd.f32 %v1253, %v1262
        %v1267 = vadd.f32 %v1254, %v1263
        %v1268 = vadd.f32 %v1255, %v1264
        %v1269 = vadd.f32 %v1256, %v1265
        %v1270 = vrot.slane %v1174, 1
        %v1271 = vrot.slane %v1176, 1
        %v1272 = vrot.slane %v1178, 1
        %v1273 = vrot.slane %v1180, 1
        %v1274 = vrot.slane %v1175, 1
        %v1275 = vrot.slane %v1177, 1
        %v1276 = vrot.slane %v1179, 1
        %v1277 = vrot.slane %v1181, 1
        %v1278 = vsel %vm405, %v1270, %v1274
        %v1279 = vsel %vm405, %v1271, %v1275
        %v1280 = vsel %vm405, %v1272, %v1276
        %v1281 = vsel %vm405, %v1273, %v1277
        %v1282 = vld [vmem:[%s221 + $0x27] sm:$0x1]
        %v1283 = vlaneseq
        %v1284 = vshrl.u32 %v1283, 7
        %v1285 = vsub.s32 0, %v1284
        %v1286 = vrot.slane %v1282, %v1285
        %v1287 = vmul.f32 %v1278, %v1286
        %v1288 = vmul.f32 %v1279, %v1286
        %v1289 = vmul.f32 %v1280, %v1286
        %v1290 = vmul.f32 %v1281, %v1286
        %v1291 = vadd.f32 %v1266, %v1287
        %v1292 = vadd.f32 %v1267, %v1288
        %v1293 = vadd.f32 %v1268, %v1289
        %v1294 = vadd.f32 %v1269, %v1290
        %v1295 = vrot.slane %v1174, 2
        %v1296 = vrot.slane %v1176, 2
        %v1297 = vrot.slane %v1178, 2
        %v1298 = vrot.slane %v1180, 2
        %v1299 = vrot.slane %v1175, 2
        %v1300 = vrot.slane %v1177, 2
        %v1301 = vrot.slane %v1179, 2
        %v1302 = vrot.slane %v1181, 2
        %v1303 = vsel %vm431, %v1295, %v1299
        %v1304 = vsel %vm431, %v1296, %v1300
        %v1305 = vsel %vm431, %v1297, %v1301
        %v1306 = vsel %vm431, %v1298, %v1302
        %v1307 = vld [vmem:[%s221 + $0x28] sm:$0x1]
        %v1308 = vlaneseq
        %v1309 = vshrl.u32 %v1308, 7
        %v1310 = vsub.s32 0, %v1309
        %v1311 = vrot.slane %v1307, %v1310
        %v1312 = vmul.f32 %v1303, %v1311
        %v1313 = vmul.f32 %v1304, %v1311
        %v1314 = vmul.f32 %v1305, %v1311
        %v1315 = vmul.f32 %v1306, %v1311
        %v1316 = vadd.f32 %v1291, %v1312
        %v1317 = vadd.f32 %v1292, %v1313
        %v1318 = vadd.f32 %v1293, %v1314
        %v1319 = vadd.f32 %v1294, %v1315
        %v1320 = vrot.slane %v1174, 3
        %v1321 = vrot.slane %v1176, 3
        %v1322 = vrot.slane %v1178, 3
        %v1323 = vrot.slane %v1180, 3
        %v1324 = vrot.slane %v1175, 3
        %v1325 = vrot.slane %v1177, 3
        %v1326 = vrot.slane %v1179, 3
        %v1327 = vrot.slane %v1181, 3
        %v1328 = vsel %vm457, %v1320, %v1324
        %v1329 = vsel %vm457, %v1321, %v1325
        %v1330 = vsel %vm457, %v1322, %v1326
        %v1331 = vsel %vm457, %v1323, %v1327
        %v1332 = vld [vmem:[%s221 + $0x29] sm:$0x1]
        %v1333 = vlaneseq
        %v1334 = vshrl.u32 %v1333, 7
        %v1335 = vsub.s32 0, %v1334
        %v1336 = vrot.slane %v1332, %v1335
        %v1337 = vmul.f32 %v1328, %v1336
        %v1338 = vmul.f32 %v1329, %v1336
        %v1339 = vmul.f32 %v1330, %v1336
        %v1340 = vmul.f32 %v1331, %v1336
        %v1341 = vadd.f32 %v1316, %v1337
        %v1342 = vadd.f32 %v1317, %v1338
        %v1343 = vadd.f32 %v1318, %v1339
        %v1344 = vadd.f32 %v1319, %v1340
        %s1345 = sadd.s32 %s287, 6
        %s1346 = smul.u32 %s1345, 16
        %s1347 = scalar_lea.vmem [#allocation2], %s1346
        %v1348 = vld [vmem:[%s1347] sm:$0xff]
        %v1349 = vld [vmem:[%s1347 + $0x8] sm:$0xff]
        %v1350 = vld [vmem:[%s1347 + $0x10] sm:$0xff]
        %v1351 = vld [vmem:[%s1347 + $0x18] sm:$0xff]
        %v1352 = vld [vmem:[%s1347 + $0x20] sm:$0xff]
        %v1353 = vld [vmem:[%s1347 + $0x28] sm:$0xff]
        %v1354 = vld [vmem:[%s1347 + $0x30] sm:$0xff]
        %v1355 = vld [vmem:[%s1347 + $0x38] sm:$0xff]
        %v1356 = vrot.slane %v1348, 5
        %v1357 = vrot.slane %v1350, 5
        %v1358 = vrot.slane %v1352, 5
        %v1359 = vrot.slane %v1354, 5
        %v1360 = vrot.slane %v1349, 5
        %v1361 = vrot.slane %v1351, 5
        %v1362 = vrot.slane %v1353, 5
        %v1363 = vrot.slane %v1355, 5
        %v1364 = vsel %vm314, %v1360, %v1356
        %v1365 = vsel %vm314, %v1361, %v1357
        %v1366 = vsel %vm314, %v1362, %v1358
        %v1367 = vsel %vm314, %v1363, %v1359
        %v1368 = vld [vmem:[%s221 + $0x2a] sm:$0x1]
        %v1369 = vlaneseq
        %v1370 = vshrl.u32 %v1369, 7
        %v1371 = vsub.s32 0, %v1370
        %v1372 = vrot.slane %v1368, %v1371
        %v1373 = vmul.f32 %v1364, %v1372
        %v1374 = vmul.f32 %v1365, %v1372
        %v1375 = vmul.f32 %v1366, %v1372
        %v1376 = vmul.f32 %v1367, %v1372
        %v1377 = vadd.f32 %v1341, %v1373
        %v1378 = vadd.f32 %v1342, %v1374
        %v1379 = vadd.f32 %v1343, %v1375
        %v1380 = vadd.f32 %v1344, %v1376
        %v1381 = vrot.slane %v1348, 6
        %v1382 = vrot.slane %v1350, 6
        %v1383 = vrot.slane %v1352, 6
        %v1384 = vrot.slane %v1354, 6
        %v1385 = vrot.slane %v1349, 6
        %v1386 = vrot.slane %v1351, 6
        %v1387 = vrot.slane %v1353, 6
        %v1388 = vrot.slane %v1355, 6
        %v1389 = vsel %vm340, %v1385, %v1381
        %v1390 = vsel %vm340, %v1386, %v1382
        %v1391 = vsel %vm340, %v1387, %v1383
        %v1392 = vsel %vm340, %v1388, %v1384
        %v1393 = vld [vmem:[%s221 + $0x2b] sm:$0x1]
        %v1394 = vlaneseq
        %v1395 = vshrl.u32 %v1394, 7
        %v1396 = vsub.s32 0, %v1395
        %v1397 = vrot.slane %v1393, %v1396
        %v1398 = vmul.f32 %v1389, %v1397
        %v1399 = vmul.f32 %v1390, %v1397
        %v1400 = vmul.f32 %v1391, %v1397
        %v1401 = vmul.f32 %v1392, %v1397
        %v1402 = vadd.f32 %v1377, %v1398
        %v1403 = vadd.f32 %v1378, %v1399
        %v1404 = vadd.f32 %v1379, %v1400
        %v1405 = vadd.f32 %v1380, %v1401
        %v1406 = vrot.slane %v1348, 7
        %v1407 = vrot.slane %v1350, 7
        %v1408 = vrot.slane %v1352, 7
        %v1409 = vrot.slane %v1354, 7
        %v1410 = vrot.slane %v1349, 7
        %v1411 = vrot.slane %v1351, 7
        %v1412 = vrot.slane %v1353, 7
        %v1413 = vrot.slane %v1355, 7
        %v1414 = vsel %vm366, %v1410, %v1406
        %v1415 = vsel %vm366, %v1411, %v1407
        %v1416 = vsel %vm366, %v1412, %v1408
        %v1417 = vsel %vm366, %v1413, %v1409
        %v1418 = vld [vmem:[%s221 + $0x2c] sm:$0x1]
        %v1419 = vlaneseq
        %v1420 = vshrl.u32 %v1419, 7
        %v1421 = vsub.s32 0, %v1420
        %v1422 = vrot.slane %v1418, %v1421
        %v1423 = vmul.f32 %v1414, %v1422
        %v1424 = vmul.f32 %v1415, %v1422
        %v1425 = vmul.f32 %v1416, %v1422
        %v1426 = vmul.f32 %v1417, %v1422
        %v1427 = vadd.f32 %v1402, %v1423
        %v1428 = vadd.f32 %v1403, %v1424
        %v1429 = vadd.f32 %v1404, %v1425
        %v1430 = vadd.f32 %v1405, %v1426
        %v1431 = vld [vmem:[%s221 + $0x2d] sm:$0x1]
        %v1432 = vlaneseq
        %v1433 = vshrl.u32 %v1432, 7
        %v1434 = vsub.s32 0, %v1433
        %v1435 = vrot.slane %v1431, %v1434
        %v1436 = vmul.f32 %v1348, %v1435
        %v1437 = vmul.f32 %v1350, %v1435
        %v1438 = vmul.f32 %v1352, %v1435
        %v1439 = vmul.f32 %v1354, %v1435
        %v1440 = vadd.f32 %v1427, %v1436
        %v1441 = vadd.f32 %v1428, %v1437
        %v1442 = vadd.f32 %v1429, %v1438
        %v1443 = vadd.f32 %v1430, %v1439
        %v1444 = vrot.slane %v1348, 1
        %v1445 = vrot.slane %v1350, 1
        %v1446 = vrot.slane %v1352, 1
        %v1447 = vrot.slane %v1354, 1
        %v1448 = vrot.slane %v1349, 1
        %v1449 = vrot.slane %v1351, 1
        %v1450 = vrot.slane %v1353, 1
        %v1451 = vrot.slane %v1355, 1
        %v1452 = vsel %vm405, %v1444, %v1448
        %v1453 = vsel %vm405, %v1445, %v1449
        %v1454 = vsel %vm405, %v1446, %v1450
        %v1455 = vsel %vm405, %v1447, %v1451
        %v1456 = vld [vmem:[%s221 + $0x2e] sm:$0x1]
        %v1457 = vlaneseq
        %v1458 = vshrl.u32 %v1457, 7
        %v1459 = vsub.s32 0, %v1458
        %v1460 = vrot.slane %v1456, %v1459
        %v1461 = vmul.f32 %v1452, %v1460
        %v1462 = vmul.f32 %v1453, %v1460
        %v1463 = vmul.f32 %v1454, %v1460
        %v1464 = vmul.f32 %v1455, %v1460
        %v1465 = vadd.f32 %v1440, %v1461
        %v1466 = vadd.f32 %v1441, %v1462
        %v1467 = vadd.f32 %v1442, %v1463
        %v1468 = vadd.f32 %v1443, %v1464
        %v1469 = vrot.slane %v1348, 2
        %v1470 = vrot.slane %v1350, 2
        %v1471 = vrot.slane %v1352, 2
        %v1472 = vrot.slane %v1354, 2
        %v1473 = vrot.slane %v1349, 2
        %v1474 = vrot.slane %v1351, 2
        %v1475 = vrot.slane %v1353, 2
        %v1476 = vrot.slane %v1355, 2
        %v1477 = vsel %vm431, %v1469, %v1473
        %v1478 = vsel %vm431, %v1470, %v1474
        %v1479 = vsel %vm431, %v1471, %v1475
        %v1480 = vsel %vm431, %v1472, %v1476
        %v1481 = vld [vmem:[%s221 + $0x2f] sm:$0x1]
        %v1482 = vlaneseq
        %v1483 = vshrl.u32 %v1482, 7
        %v1484 = vsub.s32 0, %v1483
        %v1485 = vrot.slane %v1481, %v1484
        %v1486 = vmul.f32 %v1477, %v1485
        %v1487 = vmul.f32 %v1478, %v1485
        %v1488 = vmul.f32 %v1479, %v1485
        %v1489 = vmul.f32 %v1480, %v1485
        %v1490 = vadd.f32 %v1465, %v1486
        %v1491 = vadd.f32 %v1466, %v1487
        %v1492 = vadd.f32 %v1467, %v1488
        %v1493 = vadd.f32 %v1468, %v1489
        %v1494 = vrot.slane %v1348, 3
        %v1495 = vrot.slane %v1350, 3
        %v1496 = vrot.slane %v1352, 3
        %v1497 = vrot.slane %v1354, 3
        %v1498 = vrot.slane %v1349, 3
        %v1499 = vrot.slane %v1351, 3
        %v1500 = vrot.slane %v1353, 3
        %v1501 = vrot.slane %v1355, 3
        %v1502 = vsel %vm457, %v1494, %v1498
        %v1503 = vsel %vm457, %v1495, %v1499
        %v1504 = vsel %vm457, %v1496, %v1500
        %v1505 = vsel %vm457, %v1497, %v1501
        %v1506 = vld [vmem:[%s221 + $0x30] sm:$0x1]
        %v1507 = vlaneseq
        %v1508 = vshrl.u32 %v1507, 7
        %v1509 = vsub.s32 0, %v1508
        %v1510 = vrot.slane %v1506, %v1509
        %v1511 = vmul.f32 %v1502, %v1510
        %v1512 = vmul.f32 %v1503, %v1510
        %v1513 = vmul.f32 %v1504, %v1510
        %v1514 = vmul.f32 %v1505, %v1510
        %v1515 = vadd.f32 %v1490, %v1511
        %v1516 = vadd.f32 %v1491, %v1512
        %v1517 = vadd.f32 %v1492, %v1513
        %v1518 = vadd.f32 %v1493, %v1514
        %s1519 = smul.u32 %s287, 8
        %s1520 = scalar_lea.vmem %s232, %s1519
        %1521 = vst [vmem:[%s1520] sm:$0xff] %v1515
        %1522 = vst [vmem:[%s1520 + $0x8] sm:$0xff] %v1516
        %1523 = vst [vmem:[%s1520 + $0x10] sm:$0xff] %v1517
        %1524 = vst [vmem:[%s1520 + $0x18] sm:$0xff] %v1518
      $region37: #{ppeg_forward.1} parent=31 // loop_footer
        %s284 = sadd.s32 1, %s280
      $region38: #{ppeg_forward.1} parent=31 // loop_footer_branch
        %279 = sbr.rel target = $region34
      $region39: #{ppeg_forward.1} parent=31 // loop_exit
        _
      %p1525 = scmp.lt.s32.totalorder %s19, 1
      %s1526 = scalar_select %p1525, %s19, 1
      %p1527 = scmp.lt.s32.totalorder %s18, 0
      %s1528 = scalar_select %p1527, %s18, 0
      %s1529 = smul.addr %s1526, 8
      %s1530 = sadd.s32 %s1528, %s1529
      %s1531 = smul.addr %s1530, 8
      %s1532 = scalar_lea.vmem %s3, %s1531
      // Predicated region
      $region40: #{ppeg_forward.1} parent=31 // pred_check
        %p1533 = pneg %p126
      $region41: #{ppeg_forward.1} parent=31 // pred_check_branch
        %1535 = sbr.rel (%p1533) target = $region43
      $region42: #{ppeg_forward.1} parent=31 // pred_region
        _
      $region43: #{ppeg_forward.1} parent=31 // pred_fallthru
        _
    $region32: #{ppeg_forward.1} parent=5 // pred_fallthru
      _
    %p1536 = scmp.le.s32.totalorder 2, %s9
    // Predicated region
    $region44: #{ppeg_forward.1} parent=5 // pred_check
      %p1537 = pneg %p1536
    $region45: #{ppeg_forward.1} parent=5 // pred_check_branch
      %1539 = sbr.rel (%p1537) target = $region47
    $region46: #{ppeg_forward.1} parent=5 // pred_region
      %s1540 = ssub.s32 %s9, 2
      // Predicated region
      $region48: #{ppeg_forward.1} parent=46 // pred_check
        %p1541 = pneg %p132
      $region49: #{ppeg_forward.1} parent=46 // pred_check_branch
        %1543 = sbr.rel (%p1541) target = $region51
      $region50: #{ppeg_forward.1} parent=46 // pred_region
        %p1544 = scmp.lt.s32.totalorder %s21, 1
        %s1545 = scalar_select %p1544, %s21, 1
        %p1546 = scmp.lt.s32.totalorder %s20, 0
        %s1547 = scalar_select %p1546, %s20, 0
        %s1548 = smul.addr %s1545, 8
        %s1549 = sadd.s32 %s1547, %s1548
        %s1550 = smul.addr %s1549, 8
        %s1551 = scalar_lea.vmem %s3, %s1550
      $region51: #{ppeg_forward.1} parent=46 // pred_fallthru
        _
    $region47: #{ppeg_forward.1} parent=5 // pred_fallthru
      _
  $region6: #{ppeg_forward.1} parent=0 // loop_footer
    %s13 = sadd.s32 1, %s9
  $region7: #{ppeg_forward.1} parent=0 // loop_footer_branch
    %8 = sbr.rel target = $region3
  $region8: #{ppeg_forward.1} parent=0 // loop_exit
    _

</llo_original>
